<compile_context>
chip_gen: v6e
topology: v6e:2x2x1
jax: 0.10.0
libtpu: 0.0.40
codegen_flags: <defaults>
</compile_context>

<pallas_src>
import math
import numpy as np
import jax
import jax.numpy as jnp
from jax import lax
from jax.experimental import pallas as pl
from jax.experimental.pallas import tpu as pltpu

# ---------------- small, forward-consistent config (BERT-base scaled down) ---
BATCH = 2
SEQ = 8
HIDDEN = 32          # stands in for hidden_size = 768
NUM_HEADS = 4
FFN = 64
VOCAB = 64
MAX_POS = 16
LSTM_HIDDEN = 16     # stands in for lstm_hidden_size
NUM_LABELS = 1


# ============================ Pallas kernel ==================================
def _make_srl_kernel(S, B, L, NL):
    """Fused (hoisted gate matmul + VPU LSTM recurrence + VPU FC) kernel.

    Operands (whole-array VMEM residents; toy sizes):
      x_ref     (S*B, H)        bf16  time-major flattened bert output
      wcomb_ref (H, 4L)         bf16  W_emb + W_pred        (gate order [i,f,o,g])
      cst_ref   (R, 4L)  f32  packed constants:
                   rows [0:S)      pos@W_emb + (b_ih+b_hh)  per timestep
                   rows [S:S+L)    W_hh.T                   (gate order [i,f,o,g])
                   row  S+L        fc.weight (lanes [0:L))
                   row  S+L+1      fc.bias   (lane 0)
      out_ref   (S*B, NL)       f32  logits (time-major rows), un-flattened outside
    """

    def kernel(x_ref, wcomb_ref, cst_ref, out_ref):
        # ---- hoisted input-side gate pre-activations for ALL timesteps ------
        # gx[s*B+b] = bert[s,b] @ (W_emb + W_pred); the pos/bias term is added
        # per-step below via a sublane broadcast (no B-repeat materialized).
        gx = jnp.dot(x_ref[...], wcomb_ref[...],
                     preferred_element_type=jnp.float32)          # (S*B, 4L) f32

        # ---- unpack the coalesced f32 constant block (static slices) --------
        posg = cst_ref[0:S, :]                                    # (S, 4L)
        w_hh = cst_ref[S:S + L, :]                                # (L, 4L)
        fcw = cst_ref[S + L:S + L + 1, 0:L]                       # (1, L)
        fcb = cst_ref[S + L + 1:S + L + 2, 0:1]                   # (1, 1)

        # Hoist the constant W_hh row views out of the unrolled loop
        # (JAX does not CSE; emit the 16 row slices exactly once).
        w_rows = [w_hh[l:l + 1, :] for l in range(L)]             # each (1, 4L)

        h = jnp.zeros((B, L), jnp.float32)
        c = jnp.zeros((B, L), jnp.float32)
        hs = []

        # ---- recurrence: fully unrolled (S static & small).  Only the
        # VPU broadcast-multiply-add tree below is on the serial chain; the
        # gx/posg slices and adds are h-independent and overlap for free.
        for t in range(S):
            pre = gx[t * B:(t + 1) * B, :] + posg[t:t + 1, :]     # (B, 4L), off-chain

            # h @ W_hh on the VPU: 16 broadcast-multiplies + depth-4 add tree
            # (no MXU fill/drain latency on the critical path).
            terms = [h[:, l:l + 1] * w_rows[l] for l in range(L)]  # each (B, 4L)
            while len(terms) > 1:
                terms = [terms[2 * i] + terms[2 * i + 1]
                         for i in range(len(terms) // 2)]
            gates = pre + terms[0]                                # (B, 4L)

            # Gate order [i, f, o, g]: one contiguous sigmoid + one tanh (EUP).
            sg = jax.nn.sigmoid(gates[:, 0:3 * L])
            i_g = sg[:, 0:L]
            f_g = sg[:, L:2 * L]
            o_g = sg[:, 2 * L:3 * L]
            g_g = jnp.tanh(gates[:, 3 * L:4 * L])
            c = f_g * c + i_g * g_g
            h = o_g * jnp.tanh(c)
            hs.append(h)                                          # stays in registers

        # ---- epilogue: dropout is identity at inference.  NL=1 FC as a VPU
        # broadcast-multiply + lane reduction (no M=1 MXU pass), single store.
        # (At S*B=16 the store is necessarily sub-128-lane / masked; at real
        #  sizes keep the output tile lane width a multiple of 128.)
        hstack = jnp.concatenate(hs, axis=0)                      # (S*B, L)
        out_ref[...] = jnp.sum(hstack * fcw, axis=-1, keepdims=True) + fcb

    return kernel


def srl_head_pallas(bert_output, pos_emb, params):
    """bert_output (B,S,H), pos_emb (S,H) -> logits (B,S,NUM_LABELS)."""
    B, S, H = bert_output.shape
    L = LSTM_HIDDEN
    NL = NUM_LABELS

    # Repack gate order [i, f, g, o] -> [i, f, o, g] (wrapper-side, weight-only).
    def repack(w):
        return jnp.concatenate(
            [w[..., :2 * L], w[..., 3 * L:4 * L], w[..., 2 * L:3 * L]], axis=-1)

    wih = repack(params["wih_t"])                 # (2H, 4L)
    whh = repack(params["whh_t"])                 # (L, 4L)
    bias = repack(params["bias"])                 # (1, 4L)
    w_emb, w_pred = wih[:H], wih[H:]

    # Algebraic fold: (bert+pos)@W_emb + bert@W_pred = bert@(W_emb+W_pred) + pos@W_emb.
    w_comb = w_emb + w_pred                                        # (H, 4L)
    posg = pos_emb.astype(jnp.float32) @ w_emb + bias              # (S, 4L)

    # Coalesce all small f32 constants into ONE operand (posg | W_hh | fc).
    n_rows = ((S + L + 2 + 7) // 8) * 8
    cst = jnp.zeros((n_rows, 4 * L), jnp.float32)
    cst = cst.at[0:S, :].set(posg)
    cst = cst.at[S:S + L, :].set(whh)
    cst = cst.at[S + L, 0:L].set(params["fcw_t"][:, 0])
    cst = cst.at[S + L + 1, 0].set(params["fcb"][0, 0])

    # Time-major flatten: row s*B + b  <->  bert_output[b, s].
    # TODO(synk): at real (BERT-base) sizes fold this transpose into a BlockSpec
    # index_map over (s-chunk, b) blocks instead of materializing it in HBM.
    x_tm = jnp.transpose(bert_output, (1, 0, 2)).reshape(S * B, H)

    vmem = pl.BlockSpec(memory_space=pltpu.MemorySpace.VMEM)
    out_tm = pl.pallas_call(
        _make_srl_kernel(S, B, L, NL),
        out_shape=jax.ShapeDtypeStruct((S * B, NL), jnp.float32),
        in_specs=[vmem, vmem, vmem],
        out_specs=vmem,
    )(x_tm.astype(jnp.bfloat16), w_comb.astype(jnp.bfloat16), cst)

    # (S*B, NL) -> (B, S, NL)
    return jnp.transpose(out_tm.reshape(S, B, NL), (1, 0, 2))


# ==================== synthetic 1-layer BERT encoder (plain-JAX glue) ========
def layer_norm(x, g, b, eps=1e-12):
    m = jnp.mean(x, axis=-1, keepdims=True)
    v = jnp.var(x, axis=-1, keepdims=True)
    return (x - m) / jnp.sqrt(v + eps) * g + b


def bert_encoder(p, input_ids, attention_mask):
    B, S = input_ids.shape
    H, nh = HIDDEN, NUM_HEADS
    dh = H // nh
    x = (p["word_emb"][input_ids]
         + p["pos_emb"][jnp.arange(S)][None]
         + p["type_emb"][0][None, None])
    x = layer_norm(x, p["emb_ln_g"], p["emb_ln_b"])

    q = (x @ p["wq"] + p["bq"]).reshape(B, S, nh, dh).transpose(0, 2, 1, 3)
    k = (x @ p["wk"] + p["bk"]).reshape(B, S, nh, dh).transpose(0, 2, 1, 3)
    v = (x @ p["wv"] + p["bv"]).reshape(B, S, nh, dh).transpose(0, 2, 1, 3)
    scores = jnp.einsum("bhqd,bhkd->bhqk", q, k) / math.sqrt(dh)
    scores = scores + jnp.where(attention_mask[:, None, None, :], 0.0, -1e9)
    attn = jax.nn.softmax(scores, axis=-1)
    ctx = jnp.einsum("bhqk,bhkd->bhqd", attn, v).transpose(0, 2, 1, 3).reshape(B, S, H)
    x = layer_norm(x + ctx @ p["wo"] + p["bo"], p["ln1_g"], p["ln1_b"])
    ff = jax.nn.gelu(x @ p["w1"] + p["b1"]) @ p["w2"] + p["b2"]
    x = layer_norm(x + ff, p["ln2_g"], p["ln2_b"])
    return x


# ============================ full forward ===================================
def srl_forward(params, input_ids, predicate_idx):
    del predicate_idx  # unused by the reference forward (gather uses arange)
    attention_mask = input_ids != 0
    bert_output = bert_encoder(params["bert"], input_ids, attention_mask)  # (B,S,H)
    S = bert_output.shape[1]
    pos_emb = params["bert"]["pos_emb"][:S]                                # (S,H)
    logits = srl_head_pallas(bert_output, pos_emb, params)                 # (B,S,1)
    return logits
    # TODO(synk): `logits[mask]` / `padded_labels[mask]` produce dynamic shapes;
    # the boolean masking is applied host-side with numpy in __main__.


# ============================ params =========================================
def init_params(key):
    keys = list(jax.random.split(key, 24))
    kit = iter(keys)

    def u(shape, scale):
        return jax.random.uniform(next(kit), shape, jnp.float32, -scale, scale)

    H, L = HIDDEN, LSTM_HIDDEN
    sh = 1.0 / math.sqrt(H)
    bert = dict(
        word_emb=u((VOCAB, H), 0.1),
        pos_emb=u((MAX_POS, H), 0.1),
        type_emb=u((2, H), 0.1),
        emb_ln_g=jnp.ones((H,), jnp.float32), emb_ln_b=jnp.zeros((H,), jnp.float32),
        wq=u((H, H), sh), bq=jnp.zeros((H,), jnp.float32),
        wk=u((H, H), sh), bk=jnp.zeros((H,), jnp.float32),
        wv=u((H, H), sh), bv=jnp.zeros((H,), jnp.float32),
        wo=u((H, H), sh), bo=jnp.zeros((H,), jnp.float32),
        ln1_g=jnp.ones((H,), jnp.float32), ln1_b=jnp.zeros((H,), jnp.float32),
        w1=u((H, FFN), sh), b1=jnp.zeros((FFN,), jnp.float32),
        w2=u((FFN, H), 1.0 / math.sqrt(FFN)), b2=jnp.zeros((H,), jnp.float32),
        ln2_g=jnp.ones((H,), jnp.float32), ln2_b=jnp.zeros((H,), jnp.float32),
    )
    sl = 1.0 / math.sqrt(L)
    return dict(
        bert=bert,
        wih_t=u((2 * H, 4 * L), sl),            # LSTM weight_ih_l0.T  [i,f,g,o]
        whh_t=u((L, 4 * L), sl),                # LSTM weight_hh_l0.T  [i,f,g,o]
        bias=u((1, 4 * L), sl),                 # b_ih + b_hh (folded) [i,f,g,o]
        fcw_t=u((L, NUM_LABELS), sl),           # fc.weight.T
        fcb=jnp.zeros((1, NUM_LABELS), jnp.float32),
    )


# ================= pure-JAX reference of the Pallas head (sanity) ============
def lstm_fc_ref(params, bert_output, pos_emb):
    L = LSTM_HIDDEN
    B = bert_output.shape[0]
    x = jnp.concatenate([bert_output + pos_emb[None], bert_output], axis=-1)

    def cell(carry, x_t):
        h, c = carry
        gates = x_t @ params["wih_t"] + h @ params["whh_t"] + params["bias"]
        i = jax.nn.sigmoid(gates[:, :L])
        f = jax.nn.sigmoid(gates[:, L:2 * L])
        g = jnp.tanh(gates[:, 2 * L:3 * L])
        o = jax.nn.sigmoid(gates[:, 3 * L:])
        c = f * c + i * g
        h = o * jnp.tanh(c)
        return (h, c), h

    init = (jnp.zeros((B, L), jnp.float32), jnp.zeros((B, L), jnp.float32))
    _, hs = lax.scan(cell, init, jnp.transpose(x, (1, 0, 2)))
    hs = jnp.transpose(hs, (1, 0, 2))
    return hs @ params["fcw_t"] + params["fcb"]


# ============================ main ===========================================
if __name__ == "__main__":
    key = jax.random.PRNGKey(0)
    pkey, ikey, lkey, mkey = jax.random.split(key, 4)
    params = init_params(pkey)

    input_ids = jax.random.randint(ikey, (BATCH, SEQ), 1, VOCAB)
    input_ids = input_ids.at[:, -2:].set(0)        # padding -> attention_mask zeros
    predicate_idx = jnp.array([1, 2], dtype=jnp.int32)
    labels = jax.random.bernoulli(lkey, 0.5, (BATCH, SEQ)).astype(jnp.float32)
    pad = jax.random.bernoulli(mkey, 0.25, (BATCH, SEQ))
    padded_labels = jnp.where(pad, -100.0, labels)

    fwd = jax.jit(srl_forward)
    logits = fwd(params, input_ids, predicate_idx)
    jax.block_until_ready(logits)

    # Cross-check the Pallas head against a pure-JAX f32 reference
    # (tolerance covers the bf16 operands of the hoisted MXU matmul).
    bert_output = bert_encoder(params["bert"], input_ids, input_ids != 0)
    ref = lstm_fc_ref(params, bert_output, params["bert"]["pos_emb"][:SEQ])
    np.testing.assert_allclose(np.asarray(logits), np.asarray(ref),
                               rtol=5e-2, atol=5e-2)

    # Dynamic-shape boolean masking done host-side (matches logits[mask] semantics).
    mask = np.asarray(padded_labels) != -100.0
    masked_logits = np.asarray(logits)[mask]       # (n_true, NUM_LABELS)
    masked_labels = np.asarray(padded_labels)[mask]
    assert masked_logits.shape == (int(mask.sum()), NUM_LABELS)
    assert masked_labels.shape == (int(mask.sum()),)

    print("KERNEL_OK")
</pallas_src>

<mosaic_0001>
module attributes {stable_mosaic.version = 11 : i64} {
  func.func @kernel(%arg0: memref<16x32xbf16, #tpu.memory_space<vmem>>, %arg1: memref<32x64xbf16, #tpu.memory_space<vmem>>, %arg2: memref<32x64xf32, #tpu.memory_space<vmem>>, %arg3: memref<16x1xf32, #tpu.memory_space<vmem>>) attributes {dimension_semantics = [], scalar_prefetch = 0 : i64, scratch_operands = 0 : i64, tpu.core_type = #tpu.core_type<tc>} {
    %c0 = arith.constant 0 : index
    %c0_0 = arith.constant 0 : index
    %0 = vector.load %arg0[%c0, %c0_0] : memref<16x32xbf16, #tpu.memory_space<vmem>>, vector<16x32xbf16>
    %c0_1 = arith.constant 0 : index
    %c0_2 = arith.constant 0 : index
    %1 = vector.load %arg1[%c0_1, %c0_2] : memref<32x64xbf16, #tpu.memory_space<vmem>>, vector<32x64xbf16>
    %cst = arith.constant dense<0.000000e+00> : vector<16x64xf32>
    %2 = tpu.matmul %0, %1, %cst {dimension_numbers = #tpu.dot_dimension_numbers<[1], [0], [0], [1], [0, 0, 1, 1], [], []>} : vector<16x32xbf16>, vector<32x64xbf16>, vector<16x64xf32> -> vector<16x64xf32>
    %c0_3 = arith.constant 0 : index
    %c0_4 = arith.constant 0 : index
    %3 = vector.load %arg2[%c0_3, %c0_4] : memref<32x64xf32, #tpu.memory_space<vmem>>, vector<8x64xf32>
    %c8 = arith.constant 8 : index
    %c0_5 = arith.constant 0 : index
    %4 = vector.load %arg2[%c8, %c0_5] : memref<32x64xf32, #tpu.memory_space<vmem>>, vector<16x64xf32>
    %c24 = arith.constant 24 : index
    %c0_6 = arith.constant 0 : index
    %5 = vector.load %arg2[%c24, %c0_6] : memref<32x64xf32, #tpu.memory_space<vmem>>, vector<1x16xf32>
    %c25 = arith.constant 25 : index
    %c0_7 = arith.constant 0 : index
    %6 = vector.load %arg2[%c25, %c0_7] : memref<32x64xf32, #tpu.memory_space<vmem>>, vector<1x1xf32>
    %7 = vector.extract_strided_slice %4 {offsets = [0, 0], sizes = [1, 64], strides = [1, 1]} : vector<16x64xf32> to vector<1x64xf32>
    %8 = vector.extract_strided_slice %4 {offsets = [1, 0], sizes = [1, 64], strides = [1, 1]} : vector<16x64xf32> to vector<1x64xf32>
    %9 = vector.extract_strided_slice %4 {offsets = [2, 0], sizes = [1, 64], strides = [1, 1]} : vector<16x64xf32> to vector<1x64xf32>
    %10 = vector.extract_strided_slice %4 {offsets = [3, 0], sizes = [1, 64], strides = [1, 1]} : vector<16x64xf32> to vector<1x64xf32>
    %11 = vector.extract_strided_slice %4 {offsets = [4, 0], sizes = [1, 64], strides = [1, 1]} : vector<16x64xf32> to vector<1x64xf32>
    %12 = vector.extract_strided_slice %4 {offsets = [5, 0], sizes = [1, 64], strides = [1, 1]} : vector<16x64xf32> to vector<1x64xf32>
    %13 = vector.extract_strided_slice %4 {offsets = [6, 0], sizes = [1, 64], strides = [1, 1]} : vector<16x64xf32> to vector<1x64xf32>
    %14 = vector.extract_strided_slice %4 {offsets = [7, 0], sizes = [1, 64], strides = [1, 1]} : vector<16x64xf32> to vector<1x64xf32>
    %15 = vector.extract_strided_slice %4 {offsets = [8, 0], sizes = [1, 64], strides = [1, 1]} : vector<16x64xf32> to vector<1x64xf32>
    %16 = vector.extract_strided_slice %4 {offsets = [9, 0], sizes = [1, 64], strides = [1, 1]} : vector<16x64xf32> to vector<1x64xf32>
    %17 = vector.extract_strided_slice %4 {offsets = [10, 0], sizes = [1, 64], strides = [1, 1]} : vector<16x64xf32> to vector<1x64xf32>
    %18 = vector.extract_strided_slice %4 {offsets = [11, 0], sizes = [1, 64], strides = [1, 1]} : vector<16x64xf32> to vector<1x64xf32>
    %19 = vector.extract_strided_slice %4 {offsets = [12, 0], sizes = [1, 64], strides = [1, 1]} : vector<16x64xf32> to vector<1x64xf32>
    %20 = vector.extract_strided_slice %4 {offsets = [13, 0], sizes = [1, 64], strides = [1, 1]} : vector<16x64xf32> to vector<1x64xf32>
    %21 = vector.extract_strided_slice %4 {offsets = [14, 0], sizes = [1, 64], strides = [1, 1]} : vector<16x64xf32> to vector<1x64xf32>
    %22 = vector.extract_strided_slice %4 {offsets = [15, 0], sizes = [1, 64], strides = [1, 1]} : vector<16x64xf32> to vector<1x64xf32>
    %cst_8 = arith.constant 0.000000e+00 : f32
    %23 = vector.broadcast %cst_8 : f32 to vector<2x16xf32>
    %cst_9 = arith.constant 0.000000e+00 : f32
    %24 = vector.broadcast %cst_9 : f32 to vector<2x16xf32>
    %25 = vector.extract_strided_slice %2 {offsets = [0, 0], sizes = [2, 64], strides = [1, 1]} : vector<16x64xf32> to vector<2x64xf32>
    %26 = vector.extract_strided_slice %3 {offsets = [0, 0], sizes = [1, 64], strides = [1, 1]} : vector<8x64xf32> to vector<1x64xf32>
    %27 = vector.broadcast %26 : vector<1x64xf32> to vector<2x64xf32>
    %28 = arith.addf %25, %27 : vector<2x64xf32>
    %29 = vector.extract_strided_slice %23 {offsets = [0, 0], sizes = [2, 1], strides = [1, 1]} : vector<2x16xf32> to vector<2x1xf32>
    %30 = vector.broadcast %29 : vector<2x1xf32> to vector<2x64xf32>
    %31 = vector.broadcast %7 : vector<1x64xf32> to vector<2x64xf32>
    %32 = arith.mulf %30, %31 : vector<2x64xf32>
    %33 = vector.extract_strided_slice %23 {offsets = [0, 1], sizes = [2, 1], strides = [1, 1]} : vector<2x16xf32> to vector<2x1xf32>
    %34 = vector.broadcast %33 : vector<2x1xf32> to vector<2x64xf32>
    %35 = vector.broadcast %8 : vector<1x64xf32> to vector<2x64xf32>
    %36 = arith.mulf %34, %35 : vector<2x64xf32>
    %37 = vector.extract_strided_slice %23 {offsets = [0, 2], sizes = [2, 1], strides = [1, 1]} : vector<2x16xf32> to vector<2x1xf32>
    %38 = vector.broadcast %37 : vector<2x1xf32> to vector<2x64xf32>
    %39 = vector.broadcast %9 : vector<1x64xf32> to vector<2x64xf32>
    %40 = arith.mulf %38, %39 : vector<2x64xf32>
    %41 = vector.extract_strided_slice %23 {offsets = [0, 3], sizes = [2, 1], strides = [1, 1]} : vector<2x16xf32> to vector<2x1xf32>
    %42 = vector.broadcast %41 : vector<2x1xf32> to vector<2x64xf32>
    %43 = vector.broadcast %10 : vector<1x64xf32> to vector<2x64xf32>
    %44 = arith.mulf %42, %43 : vector<2x64xf32>
    %45 = vector.extract_strided_slice %23 {offsets = [0, 4], sizes = [2, 1], strides = [1, 1]} : vector<2x16xf32> to vector<2x1xf32>
    %46 = vector.broadcast %45 : vector<2x1xf32> to vector<2x64xf32>
    %47 = vector.broadcast %11 : vector<1x64xf32> to vector<2x64xf32>
    %48 = arith.mulf %46, %47 : vector<2x64xf32>
    %49 = vector.extract_strided_slice %23 {offsets = [0, 5], sizes = [2, 1], strides = [1, 1]} : vector<2x16xf32> to vector<2x1xf32>
    %50 = vector.broadcast %49 : vector<2x1xf32> to vector<2x64xf32>
    %51 = vector.broadcast %12 : vector<1x64xf32> to vector<2x64xf32>
    %52 = arith.mulf %50, %51 : vector<2x64xf32>
    %53 = vector.extract_strided_slice %23 {offsets = [0, 6], sizes = [2, 1], strides = [1, 1]} : vector<2x16xf32> to vector<2x1xf32>
    %54 = vector.broadcast %53 : vector<2x1xf32> to vector<2x64xf32>
    %55 = vector.broadcast %13 : vector<1x64xf32> to vector<2x64xf32>
    %56 = arith.mulf %54, %55 : vector<2x64xf32>
    %57 = vector.extract_strided_slice %23 {offsets = [0, 7], sizes = [2, 1], strides = [1, 1]} : vector<2x16xf32> to vector<2x1xf32>
    %58 = vector.broadcast %57 : vector<2x1xf32> to vector<2x64xf32>
    %59 = vector.broadcast %14 : vector<1x64xf32> to vector<2x64xf32>
    %60 = arith.mulf %58, %59 : vector<2x64xf32>
    %61 = vector.extract_strided_slice %23 {offsets = [0, 8], sizes = [2, 1], strides = [1, 1]} : vector<2x16xf32> to vector<2x1xf32>
    %62 = vector.broadcast %61 : vector<2x1xf32> to vector<2x64xf32>
    %63 = vector.broadcast %15 : vector<1x64xf32> to vector<2x64xf32>
    %64 = arith.mulf %62, %63 : vector<2x64xf32>
    %65 = vector.extract_strided_slice %23 {offsets = [0, 9], sizes = [2, 1], strides = [1, 1]} : vector<2x16xf32> to vector<2x1xf32>
    %66 = vector.broadcast %65 : vector<2x1xf32> to vector<2x64xf32>
    %67 = vector.broadcast %16 : vector<1x64xf32> to vector<2x64xf32>
    %68 = arith.mulf %66, %67 : vector<2x64xf32>
    %69 = vector.extract_strided_slice %23 {offsets = [0, 10], sizes = [2, 1], strides = [1, 1]} : vector<2x16xf32> to vector<2x1xf32>
    %70 = vector.broadcast %69 : vector<2x1xf32> to vector<2x64xf32>
    %71 = vector.broadcast %17 : vector<1x64xf32> to vector<2x64xf32>
    %72 = arith.mulf %70, %71 : vector<2x64xf32>
    %73 = vector.extract_strided_slice %23 {offsets = [0, 11], sizes = [2, 1], strides = [1, 1]} : vector<2x16xf32> to vector<2x1xf32>
    %74 = vector.broadcast %73 : vector<2x1xf32> to vector<2x64xf32>
    %75 = vector.broadcast %18 : vector<1x64xf32> to vector<2x64xf32>
    %76 = arith.mulf %74, %75 : vector<2x64xf32>
    %77 = vector.extract_strided_slice %23 {offsets = [0, 12], sizes = [2, 1], strides = [1, 1]} : vector<2x16xf32> to vector<2x1xf32>
    %78 = vector.broadcast %77 : vector<2x1xf32> to vector<2x64xf32>
    %79 = vector.broadcast %19 : vector<1x64xf32> to vector<2x64xf32>
    %80 = arith.mulf %78, %79 : vector<2x64xf32>
    %81 = vector.extract_strided_slice %23 {offsets = [0, 13], sizes = [2, 1], strides = [1, 1]} : vector<2x16xf32> to vector<2x1xf32>
    %82 = vector.broadcast %81 : vector<2x1xf32> to vector<2x64xf32>
    %83 = vector.broadcast %20 : vector<1x64xf32> to vector<2x64xf32>
    %84 = arith.mulf %82, %83 : vector<2x64xf32>
    %85 = vector.extract_strided_slice %23 {offsets = [0, 14], sizes = [2, 1], strides = [1, 1]} : vector<2x16xf32> to vector<2x1xf32>
    %86 = vector.broadcast %85 : vector<2x1xf32> to vector<2x64xf32>
    %87 = vector.broadcast %21 : vector<1x64xf32> to vector<2x64xf32>
    %88 = arith.mulf %86, %87 : vector<2x64xf32>
    %89 = vector.extract_strided_slice %23 {offsets = [0, 15], sizes = [2, 1], strides = [1, 1]} : vector<2x16xf32> to vector<2x1xf32>
    %90 = vector.broadcast %89 : vector<2x1xf32> to vector<2x64xf32>
    %91 = vector.broadcast %22 : vector<1x64xf32> to vector<2x64xf32>
    %92 = arith.mulf %90, %91 : vector<2x64xf32>
    %93 = arith.addf %32, %36 : vector<2x64xf32>
    %94 = arith.addf %40, %44 : vector<2x64xf32>
    %95 = arith.addf %48, %52 : vector<2x64xf32>
    %96 = arith.addf %56, %60 : vector<2x64xf32>
    %97 = arith.addf %64, %68 : vector<2x64xf32>
    %98 = arith.addf %72, %76 : vector<2x64xf32>
    %99 = arith.addf %80, %84 : vector<2x64xf32>
    %100 = arith.addf %88, %92 : vector<2x64xf32>
    %101 = arith.addf %93, %94 : vector<2x64xf32>
    %102 = arith.addf %95, %96 : vector<2x64xf32>
    %103 = arith.addf %97, %98 : vector<2x64xf32>
    %104 = arith.addf %99, %100 : vector<2x64xf32>
    %105 = arith.addf %101, %102 : vector<2x64xf32>
    %106 = arith.addf %103, %104 : vector<2x64xf32>
    %107 = arith.addf %105, %106 : vector<2x64xf32>
    %108 = arith.addf %28, %107 : vector<2x64xf32>
    %109 = vector.extract_strided_slice %108 {offsets = [0, 0], sizes = [2, 48], strides = [1, 1]} : vector<2x64xf32> to vector<2x48xf32>
    %110 = arith.negf %109 : vector<2x48xf32>
    %111 = math.exp %110 : vector<2x48xf32>
    %cst_10 = arith.constant 1.000000e+00 : f32
    %112 = vector.broadcast %cst_10 : f32 to vector<2x48xf32>
    %113 = arith.addf %112, %111 : vector<2x48xf32>
    %114 = arith.divf %112, %113 : vector<2x48xf32>
    %115 = vector.extract_strided_slice %114 {offsets = [0, 0], sizes = [2, 16], strides = [1, 1]} : vector<2x48xf32> to vector<2x16xf32>
    %116 = vector.extract_strided_slice %114 {offsets = [0, 16], sizes = [2, 16], strides = [1, 1]} : vector<2x48xf32> to vector<2x16xf32>
    %117 = vector.extract_strided_slice %114 {offsets = [0, 32], sizes = [2, 16], strides = [1, 1]} : vector<2x48xf32> to vector<2x16xf32>
    %118 = vector.extract_strided_slice %108 {offsets = [0, 48], sizes = [2, 16], strides = [1, 1]} : vector<2x64xf32> to vector<2x16xf32>
    %119 = math.tanh %118 : vector<2x16xf32>
    %120 = arith.mulf %116, %24 : vector<2x16xf32>
    %121 = arith.mulf %115, %119 : vector<2x16xf32>
    %122 = arith.addf %120, %121 : vector<2x16xf32>
    %123 = math.tanh %122 : vector<2x16xf32>
    %124 = arith.mulf %117, %123 : vector<2x16xf32>
    %125 = vector.extract_strided_slice %2 {offsets = [2, 0], sizes = [2, 64], strides = [1, 1]} : vector<16x64xf32> to vector<2x64xf32>
    %126 = vector.extract_strided_slice %3 {offsets = [1, 0], sizes = [1, 64], strides = [1, 1]} : vector<8x64xf32> to vector<1x64xf32>
    %127 = vector.broadcast %126 : vector<1x64xf32> to vector<2x64xf32>
    %128 = arith.addf %125, %127 : vector<2x64xf32>
    %129 = vector.extract_strided_slice %124 {offsets = [0, 0], sizes = [2, 1], strides = [1, 1]} : vector<2x16xf32> to vector<2x1xf32>
    %130 = vector.broadcast %129 : vector<2x1xf32> to vector<2x64xf32>
    %131 = vector.broadcast %7 : vector<1x64xf32> to vector<2x64xf32>
    %132 = arith.mulf %130, %131 : vector<2x64xf32>
    %133 = vector.extract_strided_slice %124 {offsets = [0, 1], sizes = [2, 1], strides = [1, 1]} : vector<2x16xf32> to vector<2x1xf32>
    %134 = vector.broadcast %133 : vector<2x1xf32> to vector<2x64xf32>
    %135 = vector.broadcast %8 : vector<1x64xf32> to vector<2x64xf32>
    %136 = arith.mulf %134, %135 : vector<2x64xf32>
    %137 = vector.extract_strided_slice %124 {offsets = [0, 2], sizes = [2, 1], strides = [1, 1]} : vector<2x16xf32> to vector<2x1xf32>
    %138 = vector.broadcast %137 : vector<2x1xf32> to vector<2x64xf32>
    %139 = vector.broadcast %9 : vector<1x64xf32> to vector<2x64xf32>
    %140 = arith.mulf %138, %139 : vector<2x64xf32>
    %141 = vector.extract_strided_slice %124 {offsets = [0, 3], sizes = [2, 1], strides = [1, 1]} : vector<2x16xf32> to vector<2x1xf32>
    %142 = vector.broadcast %141 : vector<2x1xf32> to vector<2x64xf32>
    %143 = vector.broadcast %10 : vector<1x64xf32> to vector<2x64xf32>
    %144 = arith.mulf %142, %143 : vector<2x64xf32>
    %145 = vector.extract_strided_slice %124 {offsets = [0, 4], sizes = [2, 1], strides = [1, 1]} : vector<2x16xf32> to vector<2x1xf32>
    %146 = vector.broadcast %145 : vector<2x1xf32> to vector<2x64xf32>
    %147 = vector.broadcast %11 : vector<1x64xf32> to vector<2x64xf32>
    %148 = arith.mulf %146, %147 : vector<2x64xf32>
    %149 = vector.extract_strided_slice %124 {offsets = [0, 5], sizes = [2, 1], strides = [1, 1]} : vector<2x16xf32> to vector<2x1xf32>
    %150 = vector.broadcast %149 : vector<2x1xf32> to vector<2x64xf32>
    %151 = vector.broadcast %12 : vector<1x64xf32> to vector<2x64xf32>
    %152 = arith.mulf %150, %151 : vector<2x64xf32>
    %153 = vector.extract_strided_slice %124 {offsets = [0, 6], sizes = [2, 1], strides = [1, 1]} : vector<2x16xf32> to vector<2x1xf32>
    %154 = vector.broadcast %153 : vector<2x1xf32> to vector<2x64xf32>
    %155 = vector.broadcast %13 : vector<1x64xf32> to vector<2x64xf32>
    %156 = arith.mulf %154, %155 : vector<2x64xf32>
    %157 = vector.extract_strided_slice %124 {offsets = [0, 7], sizes = [2, 1], strides = [1, 1]} : vector<2x16xf32> to vector<2x1xf32>
    %158 = vector.broadcast %157 : vector<2x1xf32> to vector<2x64xf32>
    %159 = vector.broadcast %14 : vector<1x64xf32> to vector<2x64xf32>
    %160 = arith.mulf %158, %159 : vector<2x64xf32>
    %161 = vector.extract_strided_slice %124 {offsets = [0, 8], sizes = [2, 1], strides = [1, 1]} : vector<2x16xf32> to vector<2x1xf32>
    %162 = vector.broadcast %161 : vector<2x1xf32> to vector<2x64xf32>
    %163 = vector.broadcast %15 : vector<1x64xf32> to vector<2x64xf32>
    %164 = arith.mulf %162, %163 : vector<2x64xf32>
    %165 = vector.extract_strided_slice %124 {offsets = [0, 9], sizes = [2, 1], strides = [1, 1]} : vector<2x16xf32> to vector<2x1xf32>
    %166 = vector.broadcast %165 : vector<2x1xf32> to vector<2x64xf32>
    %167 = vector.broadcast %16 : vector<1x64xf32> to vector<2x64xf32>
    %168 = arith.mulf %166, %167 : vector<2x64xf32>
    %169 = vector.extract_strided_slice %124 {offsets = [0, 10], sizes = [2, 1], strides = [1, 1]} : vector<2x16xf32> to vector<2x1xf32>
    %170 = vector.broadcast %169 : vector<2x1xf32> to vector<2x64xf32>
    %171 = vector.broadcast %17 : vector<1x64xf32> to vector<2x64xf32>
    %172 = arith.mulf %170, %171 : vector<2x64xf32>
    %173 = vector.extract_strided_slice %124 {offsets = [0, 11], sizes = [2, 1], strides = [1, 1]} : vector<2x16xf32> to vector<2x1xf32>
    %174 = vector.broadcast %173 : vector<2x1xf32> to vector<2x64xf32>
    %175 = vector.broadcast %18 : vector<1x64xf32> to vector<2x64xf32>
    %176 = arith.mulf %174, %175 : vector<2x64xf32>
    %177 = vector.extract_strided_slice %124 {offsets = [0, 12], sizes = [2, 1], strides = [1, 1]} : vector<2x16xf32> to vector<2x1xf32>
    %178 = vector.broadcast %177 : vector<2x1xf32> to vector<2x64xf32>
    %179 = vector.broadcast %19 : vector<1x64xf32> to vector<2x64xf32>
    %180 = arith.mulf %178, %179 : vector<2x64xf32>
    %181 = vector.extract_strided_slice %124 {offsets = [0, 13], sizes = [2, 1], strides = [1, 1]} : vector<2x16xf32> to vector<2x1xf32>
    %182 = vector.broadcast %181 : vector<2x1xf32> to vector<2x64xf32>
    %183 = vector.broadcast %20 : vector<1x64xf32> to vector<2x64xf32>
    %184 = arith.mulf %182, %183 : vector<2x64xf32>
    %185 = vector.extract_strided_slice %124 {offsets = [0, 14], sizes = [2, 1], strides = [1, 1]} : vector<2x16xf32> to vector<2x1xf32>
    %186 = vector.broadcast %185 : vector<2x1xf32> to vector<2x64xf32>
    %187 = vector.broadcast %21 : vector<1x64xf32> to vector<2x64xf32>
    %188 = arith.mulf %186, %187 : vector<2x64xf32>
    %189 = vector.extract_strided_slice %124 {offsets = [0, 15], sizes = [2, 1], strides = [1, 1]} : vector<2x16xf32> to vector<2x1xf32>
    %190 = vector.broadcast %189 : vector<2x1xf32> to vector<2x64xf32>
    %191 = vector.broadcast %22 : vector<1x64xf32> to vector<2x64xf32>
    %192 = arith.mulf %190, %191 : vector<2x64xf32>
    %193 = arith.addf %132, %136 : vector<2x64xf32>
    %194 = arith.addf %140, %144 : vector<2x64xf32>
    %195 = arith.addf %148, %152 : vector<2x64xf32>
    %196 = arith.addf %156, %160 : vector<2x64xf32>
    %197 = arith.addf %164, %168 : vector<2x64xf32>
    %198 = arith.addf %172, %176 : vector<2x64xf32>
    %199 = arith.addf %180, %184 : vector<2x64xf32>
    %200 = arith.addf %188, %192 : vector<2x64xf32>
    %201 = arith.addf %193, %194 : vector<2x64xf32>
    %202 = arith.addf %195, %196 : vector<2x64xf32>
    %203 = arith.addf %197, %198 : vector<2x64xf32>
    %204 = arith.addf %199, %200 : vector<2x64xf32>
    %205 = arith.addf %201, %202 : vector<2x64xf32>
    %206 = arith.addf %203, %204 : vector<2x64xf32>
    %207 = arith.addf %205, %206 : vector<2x64xf32>
    %208 = arith.addf %128, %207 : vector<2x64xf32>
    %209 = vector.extract_strided_slice %208 {offsets = [0, 0], sizes = [2, 48], strides = [1, 1]} : vector<2x64xf32> to vector<2x48xf32>
    %210 = arith.negf %209 : vector<2x48xf32>
    %211 = math.exp %210 : vector<2x48xf32>
    %cst_11 = arith.constant 1.000000e+00 : f32
    %212 = vector.broadcast %cst_11 : f32 to vector<2x48xf32>
    %213 = arith.addf %212, %211 : vector<2x48xf32>
    %214 = arith.divf %212, %213 : vector<2x48xf32>
    %215 = vector.extract_strided_slice %214 {offsets = [0, 0], sizes = [2, 16], strides = [1, 1]} : vector<2x48xf32> to vector<2x16xf32>
    %216 = vector.extract_strided_slice %214 {offsets = [0, 16], sizes = [2, 16], strides = [1, 1]} : vector<2x48xf32> to vector<2x16xf32>
    %217 = vector.extract_strided_slice %214 {offsets = [0, 32], sizes = [2, 16], strides = [1, 1]} : vector<2x48xf32> to vector<2x16xf32>
    %218 = vector.extract_strided_slice %208 {offsets = [0, 48], sizes = [2, 16], strides = [1, 1]} : vector<2x64xf32> to vector<2x16xf32>
    %219 = math.tanh %218 : vector<2x16xf32>
    %220 = arith.mulf %216, %122 : vector<2x16xf32>
    %221 = arith.mulf %215, %219 : vector<2x16xf32>
    %222 = arith.addf %220, %221 : vector<2x16xf32>
    %223 = math.tanh %222 : vector<2x16xf32>
    %224 = arith.mulf %217, %223 : vector<2x16xf32>
    %225 = vector.extract_strided_slice %2 {offsets = [4, 0], sizes = [2, 64], strides = [1, 1]} : vector<16x64xf32> to vector<2x64xf32>
    %226 = vector.extract_strided_slice %3 {offsets = [2, 0], sizes = [1, 64], strides = [1, 1]} : vector<8x64xf32> to vector<1x64xf32>
    %227 = vector.broadcast %226 : vector<1x64xf32> to vector<2x64xf32>
    %228 = arith.addf %225, %227 : vector<2x64xf32>
    %229 = vector.extract_strided_slice %224 {offsets = [0, 0], sizes = [2, 1], strides = [1, 1]} : vector<2x16xf32> to vector<2x1xf32>
    %230 = vector.broadcast %229 : vector<2x1xf32> to vector<2x64xf32>
    %231 = vector.broadcast %7 : vector<1x64xf32> to vector<2x64xf32>
    %232 = arith.mulf %230, %231 : vector<2x64xf32>
    %233 = vector.extract_strided_slice %224 {offsets = [0, 1], sizes = [2, 1], strides = [1, 1]} : vector<2x16xf32> to vector<2x1xf32>
    %234 = vector.broadcast %233 : vector<2x1xf32> to vector<2x64xf32>
    %235 = vector.broadcast %8 : vector<1x64xf32> to vector<2x64xf32>
    %236 = arith.mulf %234, %235 : vector<2x64xf32>
    %237 = vector.extract_strided_slice %224 {offsets = [0, 2], sizes = [2, 1], strides = [1, 1]} : vector<2x16xf32> to vector<2x1xf32>
    %238 = vector.broadcast %237 : vector<2x1xf32> to vector<2x64xf32>
    %239 = vector.broadcast %9 : vector<1x64xf32> to vector<2x64xf32>
    %240 = arith.mulf %238, %239 : vector<2x64xf32>
    %241 = vector.extract_strided_slice %224 {offsets = [0, 3], sizes = [2, 1], strides = [1, 1]} : vector<2x16xf32> to vector<2x1xf32>
    %242 = vector.broadcast %241 : vector<2x1xf32> to vector<2x64xf32>
    %243 = vector.broadcast %10 : vector<1x64xf32> to vector<2x64xf32>
    %244 = arith.mulf %242, %243 : vector<2x64xf32>
    %245 = vector.extract_strided_slice %224 {offsets = [0, 4], sizes = [2, 1], strides = [1, 1]} : vector<2x16xf32> to vector<2x1xf32>
    %246 = vector.broadcast %245 : vector<2x1xf32> to vector<2x64xf32>
    %247 = vector.broadcast %11 : vector<1x64xf32> to vector<2x64xf32>
    %248 = arith.mulf %246, %247 : vector<2x64xf32>
    %249 = vector.extract_strided_slice %224 {offsets = [0, 5], sizes = [2, 1], strides = [1, 1]} : vector<2x16xf32> to vector<2x1xf32>
    %250 = vector.broadcast %249 : vector<2x1xf32> to vector<2x64xf32>
    %251 = vector.broadcast %12 : vector<1x64xf32> to vector<2x64xf32>
    %252 = arith.mulf %250, %251 : vector<2x64xf32>
    %253 = vector.extract_strided_slice %224 {offsets = [0, 6], sizes = [2, 1], strides = [1, 1]} : vector<2x16xf32> to vector<2x1xf32>
    %254 = vector.broadcast %253 : vector<2x1xf32> to vector<2x64xf32>
    %255 = vector.broadcast %13 : vector<1x64xf32> to vector<2x64xf32>
    %256 = arith.mulf %254, %255 : vector<2x64xf32>
    %257 = vector.extract_strided_slice %224 {offsets = [0, 7], sizes = [2, 1], strides = [1, 1]} : vector<2x16xf32> to vector<2x1xf32>
    %258 = vector.broadcast %257 : vector<2x1xf32> to vector<2x64xf32>
    %259 = vector.broadcast %14 : vector<1x64xf32> to vector<2x64xf32>
    %260 = arith.mulf %258, %259 : vector<2x64xf32>
    %261 = vector.extract_strided_slice %224 {offsets = [0, 8], sizes = [2, 1], strides = [1, 1]} : vector<2x16xf32> to vector<2x1xf32>
    %262 = vector.broadcast %261 : vector<2x1xf32> to vector<2x64xf32>
    %263 = vector.broadcast %15 : vector<1x64xf32> to vector<2x64xf32>
    %264 = arith.mulf %262, %263 : vector<2x64xf32>
    %265 = vector.extract_strided_slice %224 {offsets = [0, 9], sizes = [2, 1], strides = [1, 1]} : vector<2x16xf32> to vector<2x1xf32>
    %266 = vector.broadcast %265 : vector<2x1xf32> to vector<2x64xf32>
    %267 = vector.broadcast %16 : vector<1x64xf32> to vector<2x64xf32>
    %268 = arith.mulf %266, %267 : vector<2x64xf32>
    %269 = vector.extract_strided_slice %224 {offsets = [0, 10], sizes = [2, 1], strides = [1, 1]} : vector<2x16xf32> to vector<2x1xf32>
    %270 = vector.broadcast %269 : vector<2x1xf32> to vector<2x64xf32>
    %271 = vector.broadcast %17 : vector<1x64xf32> to vector<2x64xf32>
    %272 = arith.mulf %270, %271 : vector<2x64xf32>
    %273 = vector.extract_strided_slice %224 {offsets = [0, 11], sizes = [2, 1], strides = [1, 1]} : vector<2x16xf32> to vector<2x1xf32>
    %274 = vector.broadcast %273 : vector<2x1xf32> to vector<2x64xf32>
    %275 = vector.broadcast %18 : vector<1x64xf32> to vector<2x64xf32>
    %276 = arith.mulf %274, %275 : vector<2x64xf32>
    %277 = vector.extract_strided_slice %224 {offsets = [0, 12], sizes = [2, 1], strides = [1, 1]} : vector<2x16xf32> to vector<2x1xf32>
    %278 = vector.broadcast %277 : vector<2x1xf32> to vector<2x64xf32>
    %279 = vector.broadcast %19 : vector<1x64xf32> to vector<2x64xf32>
    %280 = arith.mulf %278, %279 : vector<2x64xf32>
    %281 = vector.extract_strided_slice %224 {offsets = [0, 13], sizes = [2, 1], strides = [1, 1]} : vector<2x16xf32> to vector<2x1xf32>
    %282 = vector.broadcast %281 : vector<2x1xf32> to vector<2x64xf32>
    %283 = vector.broadcast %20 : vector<1x64xf32> to vector<2x64xf32>
    %284 = arith.mulf %282, %283 : vector<2x64xf32>
    %285 = vector.extract_strided_slice %224 {offsets = [0, 14], sizes = [2, 1], strides = [1, 1]} : vector<2x16xf32> to vector<2x1xf32>
    %286 = vector.broadcast %285 : vector<2x1xf32> to vector<2x64xf32>
    %287 = vector.broadcast %21 : vector<1x64xf32> to vector<2x64xf32>
    %288 = arith.mulf %286, %287 : vector<2x64xf32>
    %289 = vector.extract_strided_slice %224 {offsets = [0, 15], sizes = [2, 1], strides = [1, 1]} : vector<2x16xf32> to vector<2x1xf32>
    %290 = vector.broadcast %289 : vector<2x1xf32> to vector<2x64xf32>
    %291 = vector.broadcast %22 : vector<1x64xf32> to vector<2x64xf32>
    %292 = arith.mulf %290, %291 : vector<2x64xf32>
    %293 = arith.addf %232, %236 : vector<2x64xf32>
    %294 = arith.addf %240, %244 : vector<2x64xf32>
    %295 = arith.addf %248, %252 : vector<2x64xf32>
    %296 = arith.addf %256, %260 : vector<2x64xf32>
    %297 = arith.addf %264, %268 : vector<2x64xf32>
    %298 = arith.addf %272, %276 : vector<2x64xf32>
    %299 = arith.addf %280, %284 : vector<2x64xf32>
    %300 = arith.addf %288, %292 : vector<2x64xf32>
    %301 = arith.addf %293, %294 : vector<2x64xf32>
    %302 = arith.addf %295, %296 : vector<2x64xf32>
    %303 = arith.addf %297, %298 : vector<2x64xf32>
    %304 = arith.addf %299, %300 : vector<2x64xf32>
    %305 = arith.addf %301, %302 : vector<2x64xf32>
    %306 = arith.addf %303, %304 : vector<2x64xf32>
    %307 = arith.addf %305, %306 : vector<2x64xf32>
    %308 = arith.addf %228, %307 : vector<2x64xf32>
    %309 = vector.extract_strided_slice %308 {offsets = [0, 0], sizes = [2, 48], strides = [1, 1]} : vector<2x64xf32> to vector<2x48xf32>
    %310 = arith.negf %309 : vector<2x48xf32>
    %311 = math.exp %310 : vector<2x48xf32>
    %cst_12 = arith.constant 1.000000e+00 : f32
    %312 = vector.broadcast %cst_12 : f32 to vector<2x48xf32>
    %313 = arith.addf %312, %311 : vector<2x48xf32>
    %314 = arith.divf %312, %313 : vector<2x48xf32>
    %315 = vector.extract_strided_slice %314 {offsets = [0, 0], sizes = [2, 16], strides = [1, 1]} : vector<2x48xf32> to vector<2x16xf32>
    %316 = vector.extract_strided_slice %314 {offsets = [0, 16], sizes = [2, 16], strides = [1, 1]} : vector<2x48xf32> to vector<2x16xf32>
    %317 = vector.extract_strided_slice %314 {offsets = [0, 32], sizes = [2, 16], strides = [1, 1]} : vector<2x48xf32> to vector<2x16xf32>
    %318 = vector.extract_strided_slice %308 {offsets = [0, 48], sizes = [2, 16], strides = [1, 1]} : vector<2x64xf32> to vector<2x16xf32>
    %319 = math.tanh %318 : vector<2x16xf32>
    %320 = arith.mulf %316, %222 : vector<2x16xf32>
    %321 = arith.mulf %315, %319 : vector<2x16xf32>
    %322 = arith.addf %320, %321 : vector<2x16xf32>
    %323 = math.tanh %322 : vector<2x16xf32>
    %324 = arith.mulf %317, %323 : vector<2x16xf32>
    %325 = vector.extract_strided_slice %2 {offsets = [6, 0], sizes = [2, 64], strides = [1, 1]} : vector<16x64xf32> to vector<2x64xf32>
    %326 = vector.extract_strided_slice %3 {offsets = [3, 0], sizes = [1, 64], strides = [1, 1]} : vector<8x64xf32> to vector<1x64xf32>
    %327 = vector.broadcast %326 : vector<1x64xf32> to vector<2x64xf32>
    %328 = arith.addf %325, %327 : vector<2x64xf32>
    %329 = vector.extract_strided_slice %324 {offsets = [0, 0], sizes = [2, 1], strides = [1, 1]} : vector<2x16xf32> to vector<2x1xf32>
    %330 = vector.broadcast %329 : vector<2x1xf32> to vector<2x64xf32>
    %331 = vector.broadcast %7 : vector<1x64xf32> to vector<2x64xf32>
    %332 = arith.mulf %330, %331 : vector<2x64xf32>
    %333 = vector.extract_strided_slice %324 {offsets = [0, 1], sizes = [2, 1], strides = [1, 1]} : vector<2x16xf32> to vector<2x1xf32>
    %334 = vector.broadcast %333 : vector<2x1xf32> to vector<2x64xf32>
    %335 = vector.broadcast %8 : vector<1x64xf32> to vector<2x64xf32>
    %336 = arith.mulf %334, %335 : vector<2x64xf32>
    %337 = vector.extract_strided_slice %324 {offsets = [0, 2], sizes = [2, 1], strides = [1, 1]} : vector<2x16xf32> to vector<2x1xf32>
    %338 = vector.broadcast %337 : vector<2x1xf32> to vector<2x64xf32>
    %339 = vector.broadcast %9 : vector<1x64xf32> to vector<2x64xf32>
    %340 = arith.mulf %338, %339 : vector<2x64xf32>
    %341 = vector.extract_strided_slice %324 {offsets = [0, 3], sizes = [2, 1], strides = [1, 1]} : vector<2x16xf32> to vector<2x1xf32>
    %342 = vector.broadcast %341 : vector<2x1xf32> to vector<2x64xf32>
    %343 = vector.broadcast %10 : vector<1x64xf32> to vector<2x64xf32>
    %344 = arith.mulf %342, %343 : vector<2x64xf32>
    %345 = vector.extract_strided_slice %324 {offsets = [0, 4], sizes = [2, 1], strides = [1, 1]} : vector<2x16xf32> to vector<2x1xf32>
    %346 = vector.broadcast %345 : vector<2x1xf32> to vector<2x64xf32>
    %347 = vector.broadcast %11 : vector<1x64xf32> to vector<2x64xf32>
    %348 = arith.mulf %346, %347 : vector<2x64xf32>
    %349 = vector.extract_strided_slice %324 {offsets = [0, 5], sizes = [2, 1], strides = [1, 1]} : vector<2x16xf32> to vector<2x1xf32>
    %350 = vector.broadcast %349 : vector<2x1xf32> to vector<2x64xf32>
    %351 = vector.broadcast %12 : vector<1x64xf32> to vector<2x64xf32>
    %352 = arith.mulf %350, %351 : vector<2x64xf32>
    %353 = vector.extract_strided_slice %324 {offsets = [0, 6], sizes = [2, 1], strides = [1, 1]} : vector<2x16xf32> to vector<2x1xf32>
    %354 = vector.broadcast %353 : vector<2x1xf32> to vector<2x64xf32>
    %355 = vector.broadcast %13 : vector<1x64xf32> to vector<2x64xf32>
    %356 = arith.mulf %354, %355 : vector<2x64xf32>
    %357 = vector.extract_strided_slice %324 {offsets = [0, 7], sizes = [2, 1], strides = [1, 1]} : vector<2x16xf32> to vector<2x1xf32>
    %358 = vector.broadcast %357 : vector<2x1xf32> to vector<2x64xf32>
    %359 = vector.broadcast %14 : vector<1x64xf32> to vector<2x64xf32>
    %360 = arith.mulf %358, %359 : vector<2x64xf32>
    %361 = vector.extract_strided_slice %324 {offsets = [0, 8], sizes = [2, 1], strides = [1, 1]} : vector<2x16xf32> to vector<2x1xf32>
    %362 = vector.broadcast %361 : vector<2x1xf32> to vector<2x64xf32>
    %363 = vector.broadcast %15 : vector<1x64xf32> to vector<2x64xf32>
    %364 = arith.mulf %362, %363 : vector<2x64xf32>
    %365 = vector.extract_strided_slice %324 {offsets = [0, 9], sizes = [2, 1], strides = [1, 1]} : vector<2x16xf32> to vector<2x1xf32>
    %366 = vector.broadcast %365 : vector<2x1xf32> to vector<2x64xf32>
    %367 = vector.broadcast %16 : vector<1x64xf32> to vector<2x64xf32>
    %368 = arith.mulf %366, %367 : vector<2x64xf32>
    %369 = vector.extract_strided_slice %324 {offsets = [0, 10], sizes = [2, 1], strides = [1, 1]} : vector<2x16xf32> to vector<2x1xf32>
    %370 = vector.broadcast %369 : vector<2x1xf32> to vector<2x64xf32>
    %371 = vector.broadcast %17 : vector<1x64xf32> to vector<2x64xf32>
    %372 = arith.mulf %370, %371 : vector<2x64xf32>
    %373 = vector.extract_strided_slice %324 {offsets = [0, 11], sizes = [2, 1], strides = [1, 1]} : vector<2x16xf32> to vector<2x1xf32>
    %374 = vector.broadcast %373 : vector<2x1xf32> to vector<2x64xf32>
    %375 = vector.broadcast %18 : vector<1x64xf32> to vector<2x64xf32>
    %376 = arith.mulf %374, %375 : vector<2x64xf32>
    %377 = vector.extract_strided_slice %324 {offsets = [0, 12], sizes = [2, 1], strides = [1, 1]} : vector<2x16xf32> to vector<2x1xf32>
    %378 = vector.broadcast %377 : vector<2x1xf32> to vector<2x64xf32>
    %379 = vector.broadcast %19 : vector<1x64xf32> to vector<2x64xf32>
    %380 = arith.mulf %378, %379 : vector<2x64xf32>
    %381 = vector.extract_strided_slice %324 {offsets = [0, 13], sizes = [2, 1], strides = [1, 1]} : vector<2x16xf32> to vector<2x1xf32>
    %382 = vector.broadcast %381 : vector<2x1xf32> to vector<2x64xf32>
    %383 = vector.broadcast %20 : vector<1x64xf32> to vector<2x64xf32>
    %384 = arith.mulf %382, %383 : vector<2x64xf32>
    %385 = vector.extract_strided_slice %324 {offsets = [0, 14], sizes = [2, 1], strides = [1, 1]} : vector<2x16xf32> to vector<2x1xf32>
    %386 = vector.broadcast %385 : vector<2x1xf32> to vector<2x64xf32>
    %387 = vector.broadcast %21 : vector<1x64xf32> to vector<2x64xf32>
    %388 = arith.mulf %386, %387 : vector<2x64xf32>
    %389 = vector.extract_strided_slice %324 {offsets = [0, 15], sizes = [2, 1], strides = [1, 1]} : vector<2x16xf32> to vector<2x1xf32>
    %390 = vector.broadcast %389 : vector<2x1xf32> to vector<2x64xf32>
    %391 = vector.broadcast %22 : vector<1x64xf32> to vector<2x64xf32>
    %392 = arith.mulf %390, %391 : vector<2x64xf32>
    %393 = arith.addf %332, %336 : vector<2x64xf32>
    %394 = arith.addf %340, %344 : vector<2x64xf32>
    %395 = arith.addf %348, %352 : vector<2x64xf32>
    %396 = arith.addf %356, %360 : vector<2x64xf32>
    %397 = arith.addf %364, %368 : vector<2x64xf32>
    %398 = arith.addf %372, %376 : vector<2x64xf32>
    %399 = arith.addf %380, %384 : vector<2x64xf32>
    %400 = arith.addf %388, %392 : vector<2x64xf32>
    %401 = arith.addf %393, %394 : vector<2x64xf32>
    %402 = arith.addf %395, %396 : vector<2x64xf32>
    %403 = arith.addf %397, %398 : vector<2x64xf32>
    %404 = arith.addf %399, %400 : vector<2x64xf32>
    %405 = arith.addf %401, %402 : vector<2x64xf32>
    %406 = arith.addf %403, %404 : vector<2x64xf32>
    %407 = arith.addf %405, %406 : vector<2x64xf32>
    %408 = arith.addf %328, %407 : vector<2x64xf32>
    %409 = vector.extract_strided_slice %408 {offsets = [0, 0], sizes = [2, 48], strides = [1, 1]} : vector<2x64xf32> to vector<2x48xf32>
    %410 = arith.negf %409 : vector<2x48xf32>
    %411 = math.exp %410 : vector<2x48xf32>
    %cst_13 = arith.constant 1.000000e+00 : f32
    %412 = vector.broadcast %cst_13 : f32 to vector<2x48xf32>
    %413 = arith.addf %412, %411 : vector<2x48xf32>
    %414 = arith.divf %412, %413 : vector<2x48xf32>
    %415 = vector.extract_strided_slice %414 {offsets = [0, 0], sizes = [2, 16], strides = [1, 1]} : vector<2x48xf32> to vector<2x16xf32>
    %416 = vector.extract_strided_slice %414 {offsets = [0, 16], sizes = [2, 16], strides = [1, 1]} : vector<2x48xf32> to vector<2x16xf32>
    %417 = vector.extract_strided_slice %414 {offsets = [0, 32], sizes = [2, 16], strides = [1, 1]} : vector<2x48xf32> to vector<2x16xf32>
    %418 = vector.extract_strided_slice %408 {offsets = [0, 48], sizes = [2, 16], strides = [1, 1]} : vector<2x64xf32> to vector<2x16xf32>
    %419 = math.tanh %418 : vector<2x16xf32>
    %420 = arith.mulf %416, %322 : vector<2x16xf32>
    %421 = arith.mulf %415, %419 : vector<2x16xf32>
    %422 = arith.addf %420, %421 : vector<2x16xf32>
    %423 = math.tanh %422 : vector<2x16xf32>
    %424 = arith.mulf %417, %423 : vector<2x16xf32>
    %425 = vector.extract_strided_slice %2 {offsets = [8, 0], sizes = [2, 64], strides = [1, 1]} : vector<16x64xf32> to vector<2x64xf32>
    %426 = vector.extract_strided_slice %3 {offsets = [4, 0], sizes = [1, 64], strides = [1, 1]} : vector<8x64xf32> to vector<1x64xf32>
    %427 = vector.broadcast %426 : vector<1x64xf32> to vector<2x64xf32>
    %428 = arith.addf %425, %427 : vector<2x64xf32>
    %429 = vector.extract_strided_slice %424 {offsets = [0, 0], sizes = [2, 1], strides = [1, 1]} : vector<2x16xf32> to vector<2x1xf32>
    %430 = vector.broadcast %429 : vector<2x1xf32> to vector<2x64xf32>
    %431 = vector.broadcast %7 : vector<1x64xf32> to vector<2x64xf32>
    %432 = arith.mulf %430, %431 : vector<2x64xf32>
    %433 = vector.extract_strided_slice %424 {offsets = [0, 1], sizes = [2, 1], strides = [1, 1]} : vector<2x16xf32> to vector<2x1xf32>
    %434 = vector.broadcast %433 : vector<2x1xf32> to vector<2x64xf32>
    %435 = vector.broadcast %8 : vector<1x64xf32> to vector<2x64xf32>
    %436 = arith.mulf %434, %435 : vector<2x64xf32>
    %437 = vector.extract_strided_slice %424 {offsets = [0, 2], sizes = [2, 1], strides = [1, 1]} : vector<2x16xf32> to vector<2x1xf32>
    %438 = vector.broadcast %437 : vector<2x1xf32> to vector<2x64xf32>
    %439 = vector.broadcast %9 : vector<1x64xf32> to vector<2x64xf32>
    %440 = arith.mulf %438, %439 : vector<2x64xf32>
    %441 = vector.extract_strided_slice %424 {offsets = [0, 3], sizes = [2, 1], strides = [1, 1]} : vector<2x16xf32> to vector<2x1xf32>
    %442 = vector.broadcast %441 : vector<2x1xf32> to vector<2x64xf32>
    %443 = vector.broadcast %10 : vector<1x64xf32> to vector<2x64xf32>
    %444 = arith.mulf %442, %443 : vector<2x64xf32>
    %445 = vector.extract_strided_slice %424 {offsets = [0, 4], sizes = [2, 1], strides = [1, 1]} : vector<2x16xf32> to vector<2x1xf32>
    %446 = vector.broadcast %445 : vector<2x1xf32> to vector<2x64xf32>
    %447 = vector.broadcast %11 : vector<1x64xf32> to vector<2x64xf32>
    %448 = arith.mulf %446, %447 : vector<2x64xf32>
    %449 = vector.extract_strided_slice %424 {offsets = [0, 5], sizes = [2, 1], strides = [1, 1]} : vector<2x16xf32> to vector<2x1xf32>
    %450 = vector.broadcast %449 : vector<2x1xf32> to vector<2x64xf32>
    %451 = vector.broadcast %12 : vector<1x64xf32> to vector<2x64xf32>
    %452 = arith.mulf %450, %451 : vector<2x64xf32>
    %453 = vector.extract_strided_slice %424 {offsets = [0, 6], sizes = [2, 1], strides = [1, 1]} : vector<2x16xf32> to vector<2x1xf32>
    %454 = vector.broadcast %453 : vector<2x1xf32> to vector<2x64xf32>
    %455 = vector.broadcast %13 : vector<1x64xf32> to vector<2x64xf32>
    %456 = arith.mulf %454, %455 : vector<2x64xf32>
    %457 = vector.extract_strided_slice %424 {offsets = [0, 7], sizes = [2, 1], strides = [1, 1]} : vector<2x16xf32> to vector<2x1xf32>
    %458 = vector.broadcast %457 : vector<2x1xf32> to vector<2x64xf32>
    %459 = vector.broadcast %14 : vector<1x64xf32> to vector<2x64xf32>
    %460 = arith.mulf %458, %459 : vector<2x64xf32>
    %461 = vector.extract_strided_slice %424 {offsets = [0, 8], sizes = [2, 1], strides = [1, 1]} : vector<2x16xf32> to vector<2x1xf32>
    %462 = vector.broadcast %461 : vector<2x1xf32> to vector<2x64xf32>
    %463 = vector.broadcast %15 : vector<1x64xf32> to vector<2x64xf32>
    %464 = arith.mulf %462, %463 : vector<2x64xf32>
    %465 = vector.extract_strided_slice %424 {offsets = [0, 9], sizes = [2, 1], strides = [1, 1]} : vector<2x16xf32> to vector<2x1xf32>
    %466 = vector.broadcast %465 : vector<2x1xf32> to vector<2x64xf32>
    %467 = vector.broadcast %16 : vector<1x64xf32> to vector<2x64xf32>
    %468 = arith.mulf %466, %467 : vector<2x64xf32>
    %469 = vector.extract_strided_slice %424 {offsets = [0, 10], sizes = [2, 1], strides = [1, 1]} : vector<2x16xf32> to vector<2x1xf32>
    %470 = vector.broadcast %469 : vector<2x1xf32> to vector<2x64xf32>
    %471 = vector.broadcast %17 : vector<1x64xf32> to vector<2x64xf32>
    %472 = arith.mulf %470, %471 : vector<2x64xf32>
    %473 = vector.extract_strided_slice %424 {offsets = [0, 11], sizes = [2, 1], strides = [1, 1]} : vector<2x16xf32> to vector<2x1xf32>
    %474 = vector.broadcast %473 : vector<2x1xf32> to vector<2x64xf32>
    %475 = vector.broadcast %18 : vector<1x64xf32> to vector<2x64xf32>
    %476 = arith.mulf %474, %475 : vector<2x64xf32>
    %477 = vector.extract_strided_slice %424 {offsets = [0, 12], sizes = [2, 1], strides = [1, 1]} : vector<2x16xf32> to vector<2x1xf32>
    %478 = vector.broadcast %477 : vector<2x1xf32> to vector<2x64xf32>
    %479 = vector.broadcast %19 : vector<1x64xf32> to vector<2x64xf32>
    %480 = arith.mulf %478, %479 : vector<2x64xf32>
    %481 = vector.extract_strided_slice %424 {offsets = [0, 13], sizes = [2, 1], strides = [1, 1]} : vector<2x16xf32> to vector<2x1xf32>
    %482 = vector.broadcast %481 : vector<2x1xf32> to vector<2x64xf32>
    %483 = vector.broadcast %20 : vector<1x64xf32> to vector<2x64xf32>
    %484 = arith.mulf %482, %483 : vector<2x64xf32>
    %485 = vector.extract_strided_slice %424 {offsets = [0, 14], sizes = [2, 1], strides = [1, 1]} : vector<2x16xf32> to vector<2x1xf32>
    %486 = vector.broadcast %485 : vector<2x1xf32> to vector<2x64xf32>
    %487 = vector.broadcast %21 : vector<1x64xf32> to vector<2x64xf32>
    %488 = arith.mulf %486, %487 : vector<2x64xf32>
    %489 = vector.extract_strided_slice %424 {offsets = [0, 15], sizes = [2, 1], strides = [1, 1]} : vector<2x16xf32> to vector<2x1xf32>
    %490 = vector.broadcast %489 : vector<2x1xf32> to vector<2x64xf32>
    %491 = vector.broadcast %22 : vector<1x64xf32> to vector<2x64xf32>
    %492 = arith.mulf %490, %491 : vector<2x64xf32>
    %493 = arith.addf %432, %436 : vector<2x64xf32>
    %494 = arith.addf %440, %444 : vector<2x64xf32>
    %495 = arith.addf %448, %452 : vector<2x64xf32>
    %496 = arith.addf %456, %460 : vector<2x64xf32>
    %497 = arith.addf %464, %468 : vector<2x64xf32>
    %498 = arith.addf %472, %476 : vector<2x64xf32>
    %499 = arith.addf %480, %484 : vector<2x64xf32>
    %500 = arith.addf %488, %492 : vector<2x64xf32>
    %501 = arith.addf %493, %494 : vector<2x64xf32>
    %502 = arith.addf %495, %496 : vector<2x64xf32>
    %503 = arith.addf %497, %498 : vector<2x64xf32>
    %504 = arith.addf %499, %500 : vector<2x64xf32>
    %505 = arith.addf %501, %502 : vector<2x64xf32>
    %506 = arith.addf %503, %504 : vector<2x64xf32>
    %507 = arith.addf %505, %506 : vector<2x64xf32>
    %508 = arith.addf %428, %507 : vector<2x64xf32>
    %509 = vector.extract_strided_slice %508 {offsets = [0, 0], sizes = [2, 48], strides = [1, 1]} : vector<2x64xf32> to vector<2x48xf32>
    %510 = arith.negf %509 : vector<2x48xf32>
    %511 = math.exp %510 : vector<2x48xf32>
    %cst_14 = arith.constant 1.000000e+00 : f32
    %512 = vector.broadcast %cst_14 : f32 to vector<2x48xf32>
    %513 = arith.addf %512, %511 : vector<2x48xf32>
    %514 = arith.divf %512, %513 : vector<2x48xf32>
    %515 = vector.extract_strided_slice %514 {offsets = [0, 0], sizes = [2, 16], strides = [1, 1]} : vector<2x48xf32> to vector<2x16xf32>
    %516 = vector.extract_strided_slice %514 {offsets = [0, 16], sizes = [2, 16], strides = [1, 1]} : vector<2x48xf32> to vector<2x16xf32>
    %517 = vector.extract_strided_slice %514 {offsets = [0, 32], sizes = [2, 16], strides = [1, 1]} : vector<2x48xf32> to vector<2x16xf32>
    %518 = vector.extract_strided_slice %508 {offsets = [0, 48], sizes = [2, 16], strides = [1, 1]} : vector<2x64xf32> to vector<2x16xf32>
    %519 = math.tanh %518 : vector<2x16xf32>
    %520 = arith.mulf %516, %422 : vector<2x16xf32>
    %521 = arith.mulf %515, %519 : vector<2x16xf32>
    %522 = arith.addf %520, %521 : vector<2x16xf32>
    %523 = math.tanh %522 : vector<2x16xf32>
    %524 = arith.mulf %517, %523 : vector<2x16xf32>
    %525 = vector.extract_strided_slice %2 {offsets = [10, 0], sizes = [2, 64], strides = [1, 1]} : vector<16x64xf32> to vector<2x64xf32>
    %526 = vector.extract_strided_slice %3 {offsets = [5, 0], sizes = [1, 64], strides = [1, 1]} : vector<8x64xf32> to vector<1x64xf32>
    %527 = vector.broadcast %526 : vector<1x64xf32> to vector<2x64xf32>
    %528 = arith.addf %525, %527 : vector<2x64xf32>
    %529 = vector.extract_strided_slice %524 {offsets = [0, 0], sizes = [2, 1], strides = [1, 1]} : vector<2x16xf32> to vector<2x1xf32>
    %530 = vector.broadcast %529 : vector<2x1xf32> to vector<2x64xf32>
    %531 = vector.broadcast %7 : vector<1x64xf32> to vector<2x64xf32>
    %532 = arith.mulf %530, %531 : vector<2x64xf32>
    %533 = vector.extract_strided_slice %524 {offsets = [0, 1], sizes = [2, 1], strides = [1, 1]} : vector<2x16xf32> to vector<2x1xf32>
    %534 = vector.broadcast %533 : vector<2x1xf32> to vector<2x64xf32>
    %535 = vector.broadcast %8 : vector<1x64xf32> to vector<2x64xf32>
    %536 = arith.mulf %534, %535 : vector<2x64xf32>
    %537 = vector.extract_strided_slice %524 {offsets = [0, 2], sizes = [2, 1], strides = [1, 1]} : vector<2x16xf32> to vector<2x1xf32>
    %538 = vector.broadcast %537 : vector<2x1xf32> to vector<2x64xf32>
    %539 = vector.broadcast %9 : vector<1x64xf32> to vector<2x64xf32>
    %540 = arith.mulf %538, %539 : vector<2x64xf32>
    %541 = vector.extract_strided_slice %524 {offsets = [0, 3], sizes = [2, 1], strides = [1, 1]} : vector<2x16xf32> to vector<2x1xf32>
    %542 = vector.broadcast %541 : vector<2x1xf32> to vector<2x64xf32>
    %543 = vector.broadcast %10 : vector<1x64xf32> to vector<2x64xf32>
    %544 = arith.mulf %542, %543 : vector<2x64xf32>
    %545 = vector.extract_strided_slice %524 {offsets = [0, 4], sizes = [2, 1], strides = [1, 1]} : vector<2x16xf32> to vector<2x1xf32>
    %546 = vector.broadcast %545 : vector<2x1xf32> to vector<2x64xf32>
    %547 = vector.broadcast %11 : vector<1x64xf32> to vector<2x64xf32>
    %548 = arith.mulf %546, %547 : vector<2x64xf32>
    %549 = vector.extract_strided_slice %524 {offsets = [0, 5], sizes = [2, 1], strides = [1, 1]} : vector<2x16xf32> to vector<2x1xf32>
    %550 = vector.broadcast %549 : vector<2x1xf32> to vector<2x64xf32>
    %551 = vector.broadcast %12 : vector<1x64xf32> to vector<2x64xf32>
    %552 = arith.mulf %550, %551 : vector<2x64xf32>
    %553 = vector.extract_strided_slice %524 {offsets = [0, 6], sizes = [2, 1], strides = [1, 1]} : vector<2x16xf32> to vector<2x1xf32>
    %554 = vector.broadcast %553 : vector<2x1xf32> to vector<2x64xf32>
    %555 = vector.broadcast %13 : vector<1x64xf32> to vector<2x64xf32>
    %556 = arith.mulf %554, %555 : vector<2x64xf32>
    %557 = vector.extract_strided_slice %524 {offsets = [0, 7], sizes = [2, 1], strides = [1, 1]} : vector<2x16xf32> to vector<2x1xf32>
    %558 = vector.broadcast %557 : vector<2x1xf32> to vector<2x64xf32>
    %559 = vector.broadcast %14 : vector<1x64xf32> to vector<2x64xf32>
    %560 = arith.mulf %558, %559 : vector<2x64xf32>
    %561 = vector.extract_strided_slice %524 {offsets = [0, 8], sizes = [2, 1], strides = [1, 1]} : vector<2x16xf32> to vector<2x1xf32>
    %562 = vector.broadcast %561 : vector<2x1xf32> to vector<2x64xf32>
    %563 = vector.broadcast %15 : vector<1x64xf32> to vector<2x64xf32>
    %564 = arith.mulf %562, %563 : vector<2x64xf32>
    %565 = vector.extract_strided_slice %524 {offsets = [0, 9], sizes = [2, 1], strides = [1, 1]} : vector<2x16xf32> to vector<2x1xf32>
    %566 = vector.broadcast %565 : vector<2x1xf32> to vector<2x64xf32>
    %567 = vector.broadcast %16 : vector<1x64xf32> to vector<2x64xf32>
    %568 = arith.mulf %566, %567 : vector<2x64xf32>
    %569 = vector.extract_strided_slice %524 {offsets = [0, 10], sizes = [2, 1], strides = [1, 1]} : vector<2x16xf32> to vector<2x1xf32>
    %570 = vector.broadcast %569 : vector<2x1xf32> to vector<2x64xf32>
    %571 = vector.broadcast %17 : vector<1x64xf32> to vector<2x64xf32>
    %572 = arith.mulf %570, %571 : vector<2x64xf32>
    %573 = vector.extract_strided_slice %524 {offsets = [0, 11], sizes = [2, 1], strides = [1, 1]} : vector<2x16xf32> to vector<2x1xf32>
    %574 = vector.broadcast %573 : vector<2x1xf32> to vector<2x64xf32>
    %575 = vector.broadcast %18 : vector<1x64xf32> to vector<2x64xf32>
    %576 = arith.mulf %574, %575 : vector<2x64xf32>
    %577 = vector.extract_strided_slice %524 {offsets = [0, 12], sizes = [2, 1], strides = [1, 1]} : vector<2x16xf32> to vector<2x1xf32>
    %578 = vector.broadcast %577 : vector<2x1xf32> to vector<2x64xf32>
    %579 = vector.broadcast %19 : vector<1x64xf32> to vector<2x64xf32>
    %580 = arith.mulf %578, %579 : vector<2x64xf32>
    %581 = vector.extract_strided_slice %524 {offsets = [0, 13], sizes = [2, 1], strides = [1, 1]} : vector<2x16xf32> to vector<2x1xf32>
    %582 = vector.broadcast %581 : vector<2x1xf32> to vector<2x64xf32>
    %583 = vector.broadcast %20 : vector<1x64xf32> to vector<2x64xf32>
    %584 = arith.mulf %582, %583 : vector<2x64xf32>
    %585 = vector.extract_strided_slice %524 {offsets = [0, 14], sizes = [2, 1], strides = [1, 1]} : vector<2x16xf32> to vector<2x1xf32>
    %586 = vector.broadcast %585 : vector<2x1xf32> to vector<2x64xf32>
    %587 = vector.broadcast %21 : vector<1x64xf32> to vector<2x64xf32>
    %588 = arith.mulf %586, %587 : vector<2x64xf32>
    %589 = vector.extract_strided_slice %524 {offsets = [0, 15], sizes = [2, 1], strides = [1, 1]} : vector<2x16xf32> to vector<2x1xf32>
    %590 = vector.broadcast %589 : vector<2x1xf32> to vector<2x64xf32>
    %591 = vector.broadcast %22 : vector<1x64xf32> to vector<2x64xf32>
    %592 = arith.mulf %590, %591 : vector<2x64xf32>
    %593 = arith.addf %532, %536 : vector<2x64xf32>
    %594 = arith.addf %540, %544 : vector<2x64xf32>
    %595 = arith.addf %548, %552 : vector<2x64xf32>
    %596 = arith.addf %556, %560 : vector<2x64xf32>
    %597 = arith.addf %564, %568 : vector<2x64xf32>
    %598 = arith.addf %572, %576 : vector<2x64xf32>
    %599 = arith.addf %580, %584 : vector<2x64xf32>
    %600 = arith.addf %588, %592 : vector<2x64xf32>
    %601 = arith.addf %593, %594 : vector<2x64xf32>
    %602 = arith.addf %595, %596 : vector<2x64xf32>
    %603 = arith.addf %597, %598 : vector<2x64xf32>
    %604 = arith.addf %599, %600 : vector<2x64xf32>
    %605 = arith.addf %601, %602 : vector<2x64xf32>
    %606 = arith.addf %603, %604 : vector<2x64xf32>
    %607 = arith.addf %605, %606 : vector<2x64xf32>
    %608 = arith.addf %528, %607 : vector<2x64xf32>
    %609 = vector.extract_strided_slice %608 {offsets = [0, 0], sizes = [2, 48], strides = [1, 1]} : vector<2x64xf32> to vector<2x48xf32>
    %610 = arith.negf %609 : vector<2x48xf32>
    %611 = math.exp %610 : vector<2x48xf32>
    %cst_15 = arith.constant 1.000000e+00 : f32
    %612 = vector.broadcast %cst_15 : f32 to vector<2x48xf32>
    %613 = arith.addf %612, %611 : vector<2x48xf32>
    %614 = arith.divf %612, %613 : vector<2x48xf32>
    %615 = vector.extract_strided_slice %614 {offsets = [0, 0], sizes = [2, 16], strides = [1, 1]} : vector<2x48xf32> to vector<2x16xf32>
    %616 = vector.extract_strided_slice %614 {offsets = [0, 16], sizes = [2, 16], strides = [1, 1]} : vector<2x48xf32> to vector<2x16xf32>
    %617 = vector.extract_strided_slice %614 {offsets = [0, 32], sizes = [2, 16], strides = [1, 1]} : vector<2x48xf32> to vector<2x16xf32>
    %618 = vector.extract_strided_slice %608 {offsets = [0, 48], sizes = [2, 16], strides = [1, 1]} : vector<2x64xf32> to vector<2x16xf32>
    %619 = math.tanh %618 : vector<2x16xf32>
    %620 = arith.mulf %616, %522 : vector<2x16xf32>
    %621 = arith.mulf %615, %619 : vector<2x16xf32>
    %622 = arith.addf %620, %621 : vector<2x16xf32>
    %623 = math.tanh %622 : vector<2x16xf32>
    %624 = arith.mulf %617, %623 : vector<2x16xf32>
    %625 = vector.extract_strided_slice %2 {offsets = [12, 0], sizes = [2, 64], strides = [1, 1]} : vector<16x64xf32> to vector<2x64xf32>
    %626 = vector.extract_strided_slice %3 {offsets = [6, 0], sizes = [1, 64], strides = [1, 1]} : vector<8x64xf32> to vector<1x64xf32>
    %627 = vector.broadcast %626 : vector<1x64xf32> to vector<2x64xf32>
    %628 = arith.addf %625, %627 : vector<2x64xf32>
    %629 = vector.extract_strided_slice %624 {offsets = [0, 0], sizes = [2, 1], strides = [1, 1]} : vector<2x16xf32> to vector<2x1xf32>
    %630 = vector.broadcast %629 : vector<2x1xf32> to vector<2x64xf32>
    %631 = vector.broadcast %7 : vector<1x64xf32> to vector<2x64xf32>
    %632 = arith.mulf %630, %631 : vector<2x64xf32>
    %633 = vector.extract_strided_slice %624 {offsets = [0, 1], sizes = [2, 1], strides = [1, 1]} : vector<2x16xf32> to vector<2x1xf32>
    %634 = vector.broadcast %633 : vector<2x1xf32> to vector<2x64xf32>
    %635 = vector.broadcast %8 : vector<1x64xf32> to vector<2x64xf32>
    %636 = arith.mulf %634, %635 : vector<2x64xf32>
    %637 = vector.extract_strided_slice %624 {offsets = [0, 2], sizes = [2, 1], strides = [1, 1]} : vector<2x16xf32> to vector<2x1xf32>
    %638 = vector.broadcast %637 : vector<2x1xf32> to vector<2x64xf32>
    %639 = vector.broadcast %9 : vector<1x64xf32> to vector<2x64xf32>
    %640 = arith.mulf %638, %639 : vector<2x64xf32>
    %641 = vector.extract_strided_slice %624 {offsets = [0, 3], sizes = [2, 1], strides = [1, 1]} : vector<2x16xf32> to vector<2x1xf32>
    %642 = vector.broadcast %641 : vector<2x1xf32> to vector<2x64xf32>
    %643 = vector.broadcast %10 : vector<1x64xf32> to vector<2x64xf32>
    %644 = arith.mulf %642, %643 : vector<2x64xf32>
    %645 = vector.extract_strided_slice %624 {offsets = [0, 4], sizes = [2, 1], strides = [1, 1]} : vector<2x16xf32> to vector<2x1xf32>
    %646 = vector.broadcast %645 : vector<2x1xf32> to vector<2x64xf32>
    %647 = vector.broadcast %11 : vector<1x64xf32> to vector<2x64xf32>
    %648 = arith.mulf %646, %647 : vector<2x64xf32>
    %649 = vector.extract_strided_slice %624 {offsets = [0, 5], sizes = [2, 1], strides = [1, 1]} : vector<2x16xf32> to vector<2x1xf32>
    %650 = vector.broadcast %649 : vector<2x1xf32> to vector<2x64xf32>
    %651 = vector.broadcast %12 : vector<1x64xf32> to vector<2x64xf32>
    %652 = arith.mulf %650, %651 : vector<2x64xf32>
    %653 = vector.extract_strided_slice %624 {offsets = [0, 6], sizes = [2, 1], strides = [1, 1]} : vector<2x16xf32> to vector<2x1xf32>
    %654 = vector.broadcast %653 : vector<2x1xf32> to vector<2x64xf32>
    %655 = vector.broadcast %13 : vector<1x64xf32> to vector<2x64xf32>
    %656 = arith.mulf %654, %655 : vector<2x64xf32>
    %657 = vector.extract_strided_slice %624 {offsets = [0, 7], sizes = [2, 1], strides = [1, 1]} : vector<2x16xf32> to vector<2x1xf32>
    %658 = vector.broadcast %657 : vector<2x1xf32> to vector<2x64xf32>
    %659 = vector.broadcast %14 : vector<1x64xf32> to vector<2x64xf32>
    %660 = arith.mulf %658, %659 : vector<2x64xf32>
    %661 = vector.extract_strided_slice %624 {offsets = [0, 8], sizes = [2, 1], strides = [1, 1]} : vector<2x16xf32> to vector<2x1xf32>
    %662 = vector.broadcast %661 : vector<2x1xf32> to vector<2x64xf32>
    %663 = vector.broadcast %15 : vector<1x64xf32> to vector<2x64xf32>
    %664 = arith.mulf %662, %663 : vector<2x64xf32>
    %665 = vector.extract_strided_slice %624 {offsets = [0, 9], sizes = [2, 1], strides = [1, 1]} : vector<2x16xf32> to vector<2x1xf32>
    %666 = vector.broadcast %665 : vector<2x1xf32> to vector<2x64xf32>
    %667 = vector.broadcast %16 : vector<1x64xf32> to vector<2x64xf32>
    %668 = arith.mulf %666, %667 : vector<2x64xf32>
    %669 = vector.extract_strided_slice %624 {offsets = [0, 10], sizes = [2, 1], strides = [1, 1]} : vector<2x16xf32> to vector<2x1xf32>
    %670 = vector.broadcast %669 : vector<2x1xf32> to vector<2x64xf32>
    %671 = vector.broadcast %17 : vector<1x64xf32> to vector<2x64xf32>
    %672 = arith.mulf %670, %671 : vector<2x64xf32>
    %673 = vector.extract_strided_slice %624 {offsets = [0, 11], sizes = [2, 1], strides = [1, 1]} : vector<2x16xf32> to vector<2x1xf32>
    %674 = vector.broadcast %673 : vector<2x1xf32> to vector<2x64xf32>
    %675 = vector.broadcast %18 : vector<1x64xf32> to vector<2x64xf32>
    %676 = arith.mulf %674, %675 : vector<2x64xf32>
    %677 = vector.extract_strided_slice %624 {offsets = [0, 12], sizes = [2, 1], strides = [1, 1]} : vector<2x16xf32> to vector<2x1xf32>
    %678 = vector.broadcast %677 : vector<2x1xf32> to vector<2x64xf32>
    %679 = vector.broadcast %19 : vector<1x64xf32> to vector<2x64xf32>
    %680 = arith.mulf %678, %679 : vector<2x64xf32>
    %681 = vector.extract_strided_slice %624 {offsets = [0, 13], sizes = [2, 1], strides = [1, 1]} : vector<2x16xf32> to vector<2x1xf32>
    %682 = vector.broadcast %681 : vector<2x1xf32> to vector<2x64xf32>
    %683 = vector.broadcast %20 : vector<1x64xf32> to vector<2x64xf32>
    %684 = arith.mulf %682, %683 : vector<2x64xf32>
    %685 = vector.extract_strided_slice %624 {offsets = [0, 14], sizes = [2, 1], strides = [1, 1]} : vector<2x16xf32> to vector<2x1xf32>
    %686 = vector.broadcast %685 : vector<2x1xf32> to vector<2x64xf32>
    %687 = vector.broadcast %21 : vector<1x64xf32> to vector<2x64xf32>
    %688 = arith.mulf %686, %687 : vector<2x64xf32>
    %689 = vector.extract_strided_slice %624 {offsets = [0, 15], sizes = [2, 1], strides = [1, 1]} : vector<2x16xf32> to vector<2x1xf32>
    %690 = vector.broadcast %689 : vector<2x1xf32> to vector<2x64xf32>
    %691 = vector.broadcast %22 : vector<1x64xf32> to vector<2x64xf32>
    %692 = arith.mulf %690, %691 : vector<2x64xf32>
    %693 = arith.addf %632, %636 : vector<2x64xf32>
    %694 = arith.addf %640, %644 : vector<2x64xf32>
    %695 = arith.addf %648, %652 : vector<2x64xf32>
    %696 = arith.addf %656, %660 : vector<2x64xf32>
    %697 = arith.addf %664, %668 : vector<2x64xf32>
    %698 = arith.addf %672, %676 : vector<2x64xf32>
    %699 = arith.addf %680, %684 : vector<2x64xf32>
    %700 = arith.addf %688, %692 : vector<2x64xf32>
    %701 = arith.addf %693, %694 : vector<2x64xf32>
    %702 = arith.addf %695, %696 : vector<2x64xf32>
    %703 = arith.addf %697, %698 : vector<2x64xf32>
    %704 = arith.addf %699, %700 : vector<2x64xf32>
    %705 = arith.addf %701, %702 : vector<2x64xf32>
    %706 = arith.addf %703, %704 : vector<2x64xf32>
    %707 = arith.addf %705, %706 : vector<2x64xf32>
    %708 = arith.addf %628, %707 : vector<2x64xf32>
    %709 = vector.extract_strided_slice %708 {offsets = [0, 0], sizes = [2, 48], strides = [1, 1]} : vector<2x64xf32> to vector<2x48xf32>
    %710 = arith.negf %709 : vector<2x48xf32>
    %711 = math.exp %710 : vector<2x48xf32>
    %cst_16 = arith.constant 1.000000e+00 : f32
    %712 = vector.broadcast %cst_16 : f32 to vector<2x48xf32>
    %713 = arith.addf %712, %711 : vector<2x48xf32>
    %714 = arith.divf %712, %713 : vector<2x48xf32>
    %715 = vector.extract_strided_slice %714 {offsets = [0, 0], sizes = [2, 16], strides = [1, 1]} : vector<2x48xf32> to vector<2x16xf32>
    %716 = vector.extract_strided_slice %714 {offsets = [0, 16], sizes = [2, 16], strides = [1, 1]} : vector<2x48xf32> to vector<2x16xf32>
    %717 = vector.extract_strided_slice %714 {offsets = [0, 32], sizes = [2, 16], strides = [1, 1]} : vector<2x48xf32> to vector<2x16xf32>
    %718 = vector.extract_strided_slice %708 {offsets = [0, 48], sizes = [2, 16], strides = [1, 1]} : vector<2x64xf32> to vector<2x16xf32>
    %719 = math.tanh %718 : vector<2x16xf32>
    %720 = arith.mulf %716, %622 : vector<2x16xf32>
    %721 = arith.mulf %715, %719 : vector<2x16xf32>
    %722 = arith.addf %720, %721 : vector<2x16xf32>
    %723 = math.tanh %722 : vector<2x16xf32>
    %724 = arith.mulf %717, %723 : vector<2x16xf32>
    %725 = vector.extract_strided_slice %2 {offsets = [14, 0], sizes = [2, 64], strides = [1, 1]} : vector<16x64xf32> to vector<2x64xf32>
    %726 = vector.extract_strided_slice %3 {offsets = [7, 0], sizes = [1, 64], strides = [1, 1]} : vector<8x64xf32> to vector<1x64xf32>
    %727 = vector.broadcast %726 : vector<1x64xf32> to vector<2x64xf32>
    %728 = arith.addf %725, %727 : vector<2x64xf32>
    %729 = vector.extract_strided_slice %724 {offsets = [0, 0], sizes = [2, 1], strides = [1, 1]} : vector<2x16xf32> to vector<2x1xf32>
    %730 = vector.broadcast %729 : vector<2x1xf32> to vector<2x64xf32>
    %731 = vector.broadcast %7 : vector<1x64xf32> to vector<2x64xf32>
    %732 = arith.mulf %730, %731 : vector<2x64xf32>
    %733 = vector.extract_strided_slice %724 {offsets = [0, 1], sizes = [2, 1], strides = [1, 1]} : vector<2x16xf32> to vector<2x1xf32>
    %734 = vector.broadcast %733 : vector<2x1xf32> to vector<2x64xf32>
    %735 = vector.broadcast %8 : vector<1x64xf32> to vector<2x64xf32>
    %736 = arith.mulf %734, %735 : vector<2x64xf32>
    %737 = vector.extract_strided_slice %724 {offsets = [0, 2], sizes = [2, 1], strides = [1, 1]} : vector<2x16xf32> to vector<2x1xf32>
    %738 = vector.broadcast %737 : vector<2x1xf32> to vector<2x64xf32>
    %739 = vector.broadcast %9 : vector<1x64xf32> to vector<2x64xf32>
    %740 = arith.mulf %738, %739 : vector<2x64xf32>
    %741 = vector.extract_strided_slice %724 {offsets = [0, 3], sizes = [2, 1], strides = [1, 1]} : vector<2x16xf32> to vector<2x1xf32>
    %742 = vector.broadcast %741 : vector<2x1xf32> to vector<2x64xf32>
    %743 = vector.broadcast %10 : vector<1x64xf32> to vector<2x64xf32>
    %744 = arith.mulf %742, %743 : vector<2x64xf32>
    %745 = vector.extract_strided_slice %724 {offsets = [0, 4], sizes = [2, 1], strides = [1, 1]} : vector<2x16xf32> to vector<2x1xf32>
    %746 = vector.broadcast %745 : vector<2x1xf32> to vector<2x64xf32>
    %747 = vector.broadcast %11 : vector<1x64xf32> to vector<2x64xf32>
    %748 = arith.mulf %746, %747 : vector<2x64xf32>
    %749 = vector.extract_strided_slice %724 {offsets = [0, 5], sizes = [2, 1], strides = [1, 1]} : vector<2x16xf32> to vector<2x1xf32>
    %750 = vector.broadcast %749 : vector<2x1xf32> to vector<2x64xf32>
    %751 = vector.broadcast %12 : vector<1x64xf32> to vector<2x64xf32>
    %752 = arith.mulf %750, %751 : vector<2x64xf32>
    %753 = vector.extract_strided_slice %724 {offsets = [0, 6], sizes = [2, 1], strides = [1, 1]} : vector<2x16xf32> to vector<2x1xf32>
    %754 = vector.broadcast %753 : vector<2x1xf32> to vector<2x64xf32>
    %755 = vector.broadcast %13 : vector<1x64xf32> to vector<2x64xf32>
    %756 = arith.mulf %754, %755 : vector<2x64xf32>
    %757 = vector.extract_strided_slice %724 {offsets = [0, 7], sizes = [2, 1], strides = [1, 1]} : vector<2x16xf32> to vector<2x1xf32>
    %758 = vector.broadcast %757 : vector<2x1xf32> to vector<2x64xf32>
    %759 = vector.broadcast %14 : vector<1x64xf32> to vector<2x64xf32>
    %760 = arith.mulf %758, %759 : vector<2x64xf32>
    %761 = vector.extract_strided_slice %724 {offsets = [0, 8], sizes = [2, 1], strides = [1, 1]} : vector<2x16xf32> to vector<2x1xf32>
    %762 = vector.broadcast %761 : vector<2x1xf32> to vector<2x64xf32>
    %763 = vector.broadcast %15 : vector<1x64xf32> to vector<2x64xf32>
    %764 = arith.mulf %762, %763 : vector<2x64xf32>
    %765 = vector.extract_strided_slice %724 {offsets = [0, 9], sizes = [2, 1], strides = [1, 1]} : vector<2x16xf32> to vector<2x1xf32>
    %766 = vector.broadcast %765 : vector<2x1xf32> to vector<2x64xf32>
    %767 = vector.broadcast %16 : vector<1x64xf32> to vector<2x64xf32>
    %768 = arith.mulf %766, %767 : vector<2x64xf32>
    %769 = vector.extract_strided_slice %724 {offsets = [0, 10], sizes = [2, 1], strides = [1, 1]} : vector<2x16xf32> to vector<2x1xf32>
    %770 = vector.broadcast %769 : vector<2x1xf32> to vector<2x64xf32>
    %771 = vector.broadcast %17 : vector<1x64xf32> to vector<2x64xf32>
    %772 = arith.mulf %770, %771 : vector<2x64xf32>
    %773 = vector.extract_strided_slice %724 {offsets = [0, 11], sizes = [2, 1], strides = [1, 1]} : vector<2x16xf32> to vector<2x1xf32>
    %774 = vector.broadcast %773 : vector<2x1xf32> to vector<2x64xf32>
    %775 = vector.broadcast %18 : vector<1x64xf32> to vector<2x64xf32>
    %776 = arith.mulf %774, %775 : vector<2x64xf32>
    %777 = vector.extract_strided_slice %724 {offsets = [0, 12], sizes = [2, 1], strides = [1, 1]} : vector<2x16xf32> to vector<2x1xf32>
    %778 = vector.broadcast %777 : vector<2x1xf32> to vector<2x64xf32>
    %779 = vector.broadcast %19 : vector<1x64xf32> to vector<2x64xf32>
    %780 = arith.mulf %778, %779 : vector<2x64xf32>
    %781 = vector.extract_strided_slice %724 {offsets = [0, 13], sizes = [2, 1], strides = [1, 1]} : vector<2x16xf32> to vector<2x1xf32>
    %782 = vector.broadcast %781 : vector<2x1xf32> to vector<2x64xf32>
    %783 = vector.broadcast %20 : vector<1x64xf32> to vector<2x64xf32>
    %784 = arith.mulf %782, %783 : vector<2x64xf32>
    %785 = vector.extract_strided_slice %724 {offsets = [0, 14], sizes = [2, 1], strides = [1, 1]} : vector<2x16xf32> to vector<2x1xf32>
    %786 = vector.broadcast %785 : vector<2x1xf32> to vector<2x64xf32>
    %787 = vector.broadcast %21 : vector<1x64xf32> to vector<2x64xf32>
    %788 = arith.mulf %786, %787 : vector<2x64xf32>
    %789 = vector.extract_strided_slice %724 {offsets = [0, 15], sizes = [2, 1], strides = [1, 1]} : vector<2x16xf32> to vector<2x1xf32>
    %790 = vector.broadcast %789 : vector<2x1xf32> to vector<2x64xf32>
    %791 = vector.broadcast %22 : vector<1x64xf32> to vector<2x64xf32>
    %792 = arith.mulf %790, %791 : vector<2x64xf32>
    %793 = arith.addf %732, %736 : vector<2x64xf32>
    %794 = arith.addf %740, %744 : vector<2x64xf32>
    %795 = arith.addf %748, %752 : vector<2x64xf32>
    %796 = arith.addf %756, %760 : vector<2x64xf32>
    %797 = arith.addf %764, %768 : vector<2x64xf32>
    %798 = arith.addf %772, %776 : vector<2x64xf32>
    %799 = arith.addf %780, %784 : vector<2x64xf32>
    %800 = arith.addf %788, %792 : vector<2x64xf32>
    %801 = arith.addf %793, %794 : vector<2x64xf32>
    %802 = arith.addf %795, %796 : vector<2x64xf32>
    %803 = arith.addf %797, %798 : vector<2x64xf32>
    %804 = arith.addf %799, %800 : vector<2x64xf32>
    %805 = arith.addf %801, %802 : vector<2x64xf32>
    %806 = arith.addf %803, %804 : vector<2x64xf32>
    %807 = arith.addf %805, %806 : vector<2x64xf32>
    %808 = arith.addf %728, %807 : vector<2x64xf32>
    %809 = vector.extract_strided_slice %808 {offsets = [0, 0], sizes = [2, 48], strides = [1, 1]} : vector<2x64xf32> to vector<2x48xf32>
    %810 = arith.negf %809 : vector<2x48xf32>
    %811 = math.exp %810 : vector<2x48xf32>
    %cst_17 = arith.constant 1.000000e+00 : f32
    %812 = vector.broadcast %cst_17 : f32 to vector<2x48xf32>
    %813 = arith.addf %812, %811 : vector<2x48xf32>
    %814 = arith.divf %812, %813 : vector<2x48xf32>
    %815 = vector.extract_strided_slice %814 {offsets = [0, 0], sizes = [2, 16], strides = [1, 1]} : vector<2x48xf32> to vector<2x16xf32>
    %816 = vector.extract_strided_slice %814 {offsets = [0, 16], sizes = [2, 16], strides = [1, 1]} : vector<2x48xf32> to vector<2x16xf32>
    %817 = vector.extract_strided_slice %814 {offsets = [0, 32], sizes = [2, 16], strides = [1, 1]} : vector<2x48xf32> to vector<2x16xf32>
    %818 = vector.extract_strided_slice %808 {offsets = [0, 48], sizes = [2, 16], strides = [1, 1]} : vector<2x64xf32> to vector<2x16xf32>
    %819 = math.tanh %818 : vector<2x16xf32>
    %820 = arith.mulf %816, %722 : vector<2x16xf32>
    %821 = arith.mulf %815, %819 : vector<2x16xf32>
    %822 = arith.addf %820, %821 : vector<2x16xf32>
    %823 = math.tanh %822 : vector<2x16xf32>
    %824 = arith.mulf %817, %823 : vector<2x16xf32>
    %825 = tpu.concatenate %124, %224, %324, %424, %524, %624, %724, %824 in 0 : vector<2x16xf32>, vector<2x16xf32>, vector<2x16xf32>, vector<2x16xf32>, vector<2x16xf32>, vector<2x16xf32>, vector<2x16xf32>, vector<2x16xf32> -> vector<16x16xf32>
    %826 = vector.broadcast %5 : vector<1x16xf32> to vector<16x16xf32>
    %827 = arith.mulf %825, %826 : vector<16x16xf32>
    %cst_18 = arith.constant dense<0.000000e+00> : vector<16xf32>
    %828 = vector.multi_reduction <add>, %827, %cst_18 [1] : vector<16x16xf32> to vector<16xf32>
    %829 = vector.shape_cast %828 : vector<16xf32> to vector<16x1xf32>
    %830 = vector.broadcast %6 : vector<1x1xf32> to vector<16x1xf32>
    %831 = arith.addf %829, %830 : vector<16x1xf32>
    %c0_19 = arith.constant 0 : index
    %c0_20 = arith.constant 0 : index
    %832 = vector.load %arg3[%c0_19, %c0_20] : memref<16x1xf32, #tpu.memory_space<vmem>>, vector<16x1xf32>
    tpu.vector_store %arg3[%c0_19, %c0_20], %831 {strides = array<i32>} : memref<16x1xf32, #tpu.memory_space<vmem>>, vector<16x1xf32>,
    return
  }
}

</mosaic_0001>

<llo_original>
// kernel: srl_forward.1
$region0: #{srl_forward.1}
  #allocation0 [shape = 'u32[]', space=smem, size = 0x4, offset = 0x4, fixed_abs, tag = 'smem constant byte address 0x4 - core index']
  #allocation1 [shape = 'u32[144,128]{1,0:T(1,128)}', space=vmem, size = 0x12000, scoped, tag = 'internal scratch']
  %s0 = inlined_call_operand.vmem [shape: bf16[16,32], index: 0, kind: input, shape index: {}]
  %s1 = inlined_call_operand.vmem [shape: bf16[32,64], index: 1, kind: input, shape index: {}]
  %s2 = inlined_call_operand.vmem [shape: f32[32,64], index: 2, kind: input, shape index: {}]
  %s3 = inlined_call_operand.vmem [shape: f32[16,1], index: 3, kind: output, shape index: {}]
  %s4 = sld [smem:[#allocation0]]
  $region22: #{srl_forward.1} parent=0
    _
  %s6 = ssub.s32 1, %s4
  %s7 = scalar_select 0, %s6, %s4
  // Predicated region
  $region2: #{srl_forward.1} parent=0 // pred_check
    _
  $region3: #{srl_forward.1} parent=0 // pred_check_branch
    %9 = sbr.rel (0) target = $region5
  $region4: #{srl_forward.1} parent=0 // pred_region
    _
  $region5: #{srl_forward.1} parent=0 // pred_fallthru
    _
  // Predicated region
  $region6: #{srl_forward.1} parent=0 // pred_check
    _
  $region7: #{srl_forward.1} parent=0 // pred_check_branch
    %11 = sbr.rel (0) target = $region9
  $region8: #{srl_forward.1} parent=0 // pred_region
    _
  $region9: #{srl_forward.1} parent=0 // pred_fallthru
    _
  // Predicated region
  $region10: #{srl_forward.1} parent=0 // pred_check
    _
  $region11: #{srl_forward.1} parent=0 // pred_check_branch
    %13 = sbr.rel (0) target = $region13
  $region12: #{srl_forward.1} parent=0 // pred_region
    _
  $region13: #{srl_forward.1} parent=0 // pred_fallthru
    _
  %v15 = vld [vmem:[%s0] sm:$0xf]
  %v16 = vld [vmem:[%s0 + $0x4] sm:$0xf]
  %v17 = vld [vmem:[%s1] sm:$0xf]
  %v18 = vld [vmem:[%s1 + $0x4] sm:$0xf]
  %v19 = vld [vmem:[%s1 + $0x8] sm:$0xf]
  %v20 = vld [vmem:[%s1 + $0xc] sm:$0xf]
  %v23 = vunpack.c.l.b16 %v15
  %v24 = vunpack.c.l.b16 %v16
  %v25 = vpack.c.b16 %v24, %v23
  %v30 = vunpack.c.l.b16 %v17
  %v31 = vunpack.c.l.b16 %v18
  %v32 = vunpack.c.l.b16 %v19
  %v33 = vunpack.c.l.b16 %v20
  %v34 = vpack.c.b16 %v31, %v30
  %v35 = vpack.c.b16 %v33, %v32
  %vm38 = vcmask 261120
  %v40 = vsel %vm38, %v25, 0
  %42 = vmatprep.subr.bf16.mxu0 0
  %43 = vmatpush1.bf16.msra.mxu0 0
  %44 = vmatprep.subr.bf16.mxu0 0
  %45 = vmatpush1.bf16.msra.mxu0 0
  %46 = vmatprep.subr.bf16.mxu0 0
  %47 = vmatpush1.bf16.msra.mxu0 0
  %48 = vmatprep.subr.bf16.mxu0 0
  %49 = vmatpush1.bf16.msra.mxu0 0
  %50 = vmatprep.subr.bf16.mxu0 0
  %51 = vmatpush1.bf16.msra.mxu0 0
  %52 = vmatprep.subr.bf16.mxu0 0
  %53 = vmatpush1.bf16.msra.mxu0 0
  %54 = vmatprep.subr.bf16.mxu0 0
  %55 = vmatpush1.bf16.msra.mxu0 %v35
  %56 = vmatprep.subr.bf16.mxu0 0
  %57 = vmatpush1.bf16.msra.mxu0 %v34
  %58 = vmatprep.subr.bf16.mxu0 0
  %59 = vmatpush2.bf16.msra.mxu0 0
  %60 = vmatprep.subr.bf16.mxu0 0
  %61 = vmatpush2.bf16.msra.mxu0 0
  %62 = vmatprep.subr.bf16.mxu0 0
  %63 = vmatpush2.bf16.msra.mxu0 0
  %64 = vmatprep.subr.bf16.mxu0 0
  %65 = vmatpush2.bf16.msra.mxu0 0
  %66 = vmatprep.subr.bf16.mxu0 0
  %67 = vmatpush2.bf16.msra.mxu0 0
  %68 = vmatprep.subr.bf16.mxu0 0
  %69 = vmatpush2.bf16.msra.mxu0 0
  %70 = vmatprep.subr.bf16.mxu0 0
  %71 = vmatpush2.bf16.msra.mxu0 0
  %72 = vmatprep.subr.bf16.mxu0 0
  %73 = vmatpush2.bf16.msra.mxu0 0
  %74 = vmatprep.mubr.bf16.mxu0 0
  %75 = vmatmul.mubr.bf16.gmra.mxu0 %v40
  %v76 = vpop.f32.mrf.mxu0
  %v77 = vadd.f32 0.0, %v76
  %v78 = vpop.f32.mrf.mxu0
  %v79 = vpop.f32.mrf.mxu0
  %v80 = vadd.f32 0.0, %v79
  %v81 = vpop.f32.mrf.mxu0
  %82 = vdwg.mxu0
  %v83 = vld [vmem:[%s2] sm:$0xff]
  %v84 = vld [vmem:[%s2 + $0x8] sm:$0xff]
  %v85 = vld [vmem:[%s2 + $0x10] sm:$0xff]
  %v86 = vld [vmem:[%s2 + $0x18] sm:$0x1]
  %v87 = vld [vmem:[%s2 + $0x19] sm:$0x1]
  %v88 = vlaneseq
  %v89 = vshrl.u32 %v88, 7
  %v90 = vsub.s32 0, %v89
  %v91 = vrot.slane %v83, %v90
  %v92 = vadd.f32 %v77, %v91
  %v93 = vlaneseq
  %v94 = vshrl.u32 %v93, 7
  %v95 = vsub.s32 0, %v94
  %v96 = vrot.slane %v84, %v95
  %v97 = vmul.f32 %v96, 0.0
  %v98 = vlaneseq
  %v99 = vshrl.u32 %v98, 7
  %v100 = vsub.s32 1, %v99
  %v101 = vrot.slane %v84, %v100
  %v102 = vmul.f32 %v101, 0.0
  %v103 = vlaneseq
  %v104 = vshrl.u32 %v103, 7
  %v105 = vsub.s32 2, %v104
  %v106 = vrot.slane %v84, %v105
  %v107 = vmul.f32 %v106, 0.0
  %v108 = vlaneseq
  %v109 = vshrl.u32 %v108, 7
  %v110 = vsub.s32 3, %v109
  %v111 = vrot.slane %v84, %v110
  %v112 = vmul.f32 %v111, 0.0
  %v113 = vlaneseq
  %v114 = vshrl.u32 %v113, 7
  %v115 = vsub.s32 4, %v114
  %v116 = vrot.slane %v84, %v115
  %v117 = vmul.f32 %v116, 0.0
  %v118 = vlaneseq
  %v119 = vshrl.u32 %v118, 7
  %v120 = vsub.s32 5, %v119
  %v121 = vrot.slane %v84, %v120
  %v122 = vmul.f32 %v121, 0.0
  %v123 = vlaneseq
  %v124 = vshrl.u32 %v123, 7
  %v125 = vsub.s32 6, %v124
  %v126 = vrot.slane %v84, %v125
  %v127 = vmul.f32 %v126, 0.0
  %v128 = vlaneseq
  %v129 = vshrl.u32 %v128, 7
  %v130 = vsub.s32 7, %v129
  %v131 = vrot.slane %v84, %v130
  %v132 = vmul.f32 %v131, 0.0
  %v133 = vlaneseq
  %v134 = vshrl.u32 %v133, 7
  %v135 = vsub.s32 0, %v134
  %v136 = vrot.slane %v85, %v135
  %v137 = vmul.f32 %v136, 0.0
  %v138 = vlaneseq
  %v139 = vshrl.u32 %v138, 7
  %v140 = vsub.s32 1, %v139
  %v141 = vrot.slane %v85, %v140
  %v142 = vmul.f32 %v141, 0.0
  %v143 = vlaneseq
  %v144 = vshrl.u32 %v143, 7
  %v145 = vsub.s32 2, %v144
  %v146 = vrot.slane %v85, %v145
  %v147 = vmul.f32 %v146, 0.0
  %v148 = vlaneseq
  %v149 = vshrl.u32 %v148, 7
  %v150 = vsub.s32 3, %v149
  %v151 = vrot.slane %v85, %v150
  %v152 = vmul.f32 %v151, 0.0
  %v153 = vlaneseq
  %v154 = vshrl.u32 %v153, 7
  %v155 = vsub.s32 4, %v154
  %v156 = vrot.slane %v85, %v155
  %v157 = vmul.f32 %v156, 0.0
  %v158 = vlaneseq
  %v159 = vshrl.u32 %v158, 7
  %v160 = vsub.s32 5, %v159
  %v161 = vrot.slane %v85, %v160
  %v162 = vmul.f32 %v161, 0.0
  %v163 = vlaneseq
  %v164 = vshrl.u32 %v163, 7
  %v165 = vsub.s32 6, %v164
  %v166 = vrot.slane %v85, %v165
  %v167 = vmul.f32 %v166, 0.0
  %v168 = vlaneseq
  %v169 = vshrl.u32 %v168, 7
  %v170 = vsub.s32 7, %v169
  %v171 = vrot.slane %v85, %v170
  %v172 = vmul.f32 %v171, 0.0
  %v173 = vadd.f32 %v97, %v102
  %v174 = vadd.f32 %v107, %v112
  %v175 = vadd.f32 %v117, %v122
  %v176 = vadd.f32 %v127, %v132
  %v177 = vadd.f32 %v137, %v142
  %v178 = vadd.f32 %v147, %v152
  %v179 = vadd.f32 %v157, %v162
  %v180 = vadd.f32 %v167, %v172
  %v181 = vadd.f32 %v173, %v174
  %v182 = vadd.f32 %v175, %v176
  %v183 = vadd.f32 %v177, %v178
  %v184 = vadd.f32 %v179, %v180
  %v185 = vadd.f32 %v181, %v182
  %v186 = vadd.f32 %v183, %v184
  %v187 = vadd.f32 %v185, %v186
  %v188 = vadd.f32 %v92, %v187
  %v189 = vxor.u32 %v188, 2147483648
  %v190 = vmul.f32 %v189, 1.442695
  %v191 = vpow.pop %v190
  %v192 = vadd.f32 %v191, 1.0
  %v193 = vrcp.pop %v192
  %v194 = vmul.f32 1.0, %v193
  %v195 = vtanh.pop %v188
  %v196 = vmul.f32 %v194, 0.0
  %198 = vrot.lane.b32.xlu0 %v195, 80
  %v199 = vpop.permute.xlu0 %198
  %v201 = vmul.f32 %v194, %v199
  %203 = vrot.lane.b32.xlu0 %v201, 16
  %v204 = vpop.permute.xlu0 %203
  %v206 = vadd.f32 %v196, %v204
  %v207 = vtanh.pop %v206
  %209 = vrot.lane.b32.xlu0 %v207, 16
  %v210 = vpop.permute.xlu0 %209
  %v212 = vmul.f32 %v194, %v210
  %v213 = vlaneseq
  %v214 = vshrl.u32 %v213, 7
  %v215 = vsub.s32 1, %v214
  %v216 = vrot.slane %v83, %v215
  %v217 = vadd.f32 %v77, %v216
  %219 = vset.pattern.permute.xlu0 32
  %220 = vperm.xlu0 %219, %v212
  %v221 = vpop.permute.xlu0 %220
  %v223 = vmul.f32 %v221, %v96
  %224 = vset.pattern.permute.xlu0 33
  %225 = vperm.xlu0 %224, %v212
  %v226 = vpop.permute.xlu0 %225
  %v228 = vmul.f32 %v226, %v101
  %229 = vset.pattern.permute.xlu0 34
  %230 = vperm.xlu0 %229, %v212
  %v231 = vpop.permute.xlu0 %230
  %v233 = vmul.f32 %v231, %v106
  %234 = vset.pattern.permute.xlu0 35
  %235 = vperm.xlu0 %234, %v212
  %v236 = vpop.permute.xlu0 %235
  %v238 = vmul.f32 %v236, %v111
  %239 = vset.pattern.permute.xlu0 36
  %240 = vperm.xlu0 %239, %v212
  %v241 = vpop.permute.xlu0 %240
  %v243 = vmul.f32 %v241, %v116
  %244 = vset.pattern.permute.xlu0 37
  %245 = vperm.xlu0 %244, %v212
  %v246 = vpop.permute.xlu0 %245
  %v248 = vmul.f32 %v246, %v121
  %249 = vset.pattern.permute.xlu0 38
  %250 = vperm.xlu0 %249, %v212
  %v251 = vpop.permute.xlu0 %250
  %v253 = vmul.f32 %v251, %v126
  %254 = vset.pattern.permute.xlu0 39
  %255 = vperm.xlu0 %254, %v212
  %v256 = vpop.permute.xlu0 %255
  %v258 = vmul.f32 %v256, %v131
  %259 = vset.pattern.permute.xlu0 40
  %260 = vperm.xlu0 %259, %v212
  %v261 = vpop.permute.xlu0 %260
  %v263 = vmul.f32 %v261, %v136
  %264 = vset.pattern.permute.xlu0 41
  %265 = vperm.xlu0 %264, %v212
  %v266 = vpop.permute.xlu0 %265
  %v268 = vmul.f32 %v266, %v141
  %269 = vset.pattern.permute.xlu0 42
  %270 = vperm.xlu0 %269, %v212
  %v271 = vpop.permute.xlu0 %270
  %v273 = vmul.f32 %v271, %v146
  %274 = vset.pattern.permute.xlu0 43
  %275 = vperm.xlu0 %274, %v212
  %v276 = vpop.permute.xlu0 %275
  %v278 = vmul.f32 %v276, %v151
  %279 = vset.pattern.permute.xlu0 44
  %280 = vperm.xlu0 %279, %v212
  %v281 = vpop.permute.xlu0 %280
  %v283 = vmul.f32 %v281, %v156
  %284 = vset.pattern.permute.xlu0 45
  %285 = vperm.xlu0 %284, %v212
  %v286 = vpop.permute.xlu0 %285
  %v288 = vmul.f32 %v286, %v161
  %289 = vset.pattern.permute.xlu0 46
  %290 = vperm.xlu0 %289, %v212
  %v291 = vpop.permute.xlu0 %290
  %v293 = vmul.f32 %v291, %v166
  %294 = vset.pattern.permute.xlu0 47
  %295 = vperm.xlu0 %294, %v212
  %v296 = vpop.permute.xlu0 %295
  %v298 = vmul.f32 %v296, %v171
  %v299 = vadd.f32 %v223, %v228
  %v300 = vadd.f32 %v233, %v238
  %v301 = vadd.f32 %v243, %v248
  %v302 = vadd.f32 %v253, %v258
  %v303 = vadd.f32 %v263, %v268
  %v304 = vadd.f32 %v273, %v278
  %v305 = vadd.f32 %v283, %v288
  %v306 = vadd.f32 %v293, %v298
  %v307 = vadd.f32 %v299, %v300
  %v308 = vadd.f32 %v301, %v302
  %v309 = vadd.f32 %v303, %v304
  %v310 = vadd.f32 %v305, %v306
  %v311 = vadd.f32 %v307, %v308
  %v312 = vadd.f32 %v309, %v310
  %v313 = vadd.f32 %v311, %v312
  %v315 = vrot.slane %v313, 6
  %v317 = vadd.f32 %v217, %v315
  %v318 = vxor.u32 %v317, 2147483648
  %v319 = vmul.f32 %v318, 1.442695
  %v320 = vpow.pop %v319
  %v321 = vadd.f32 %v320, 1.0
  %v322 = vrcp.pop %v321
  %v323 = vmul.f32 1.0, %v322
  %v324 = vtanh.pop %v317
  %v326 = vrot.slane %v206, 6
  %v328 = vmul.f32 %v323, %v326
  %330 = vrot.lane.b32.xlu0 %v324, 80
  %v331 = vpop.permute.xlu0 %330
  %v333 = vmul.f32 %v323, %v331
  %335 = vrot.lane.b32.xlu0 %v333, 16
  %v336 = vpop.permute.xlu0 %335
  %v338 = vadd.f32 %v328, %v336
  %v339 = vtanh.pop %v338
  %341 = vrot.lane.b32.xlu0 %v339, 16
  %v342 = vpop.permute.xlu0 %341
  %v344 = vmul.f32 %v323, %v342
  %v345 = vlaneseq
  %v346 = vshrl.u32 %v345, 7
  %v347 = vsub.s32 2, %v346
  %v348 = vrot.slane %v83, %v347
  %v349 = vadd.f32 %v77, %v348
  %351 = vset.pattern.permute.xlu0 32
  %352 = vperm.xlu0 %351, %v344
  %v353 = vpop.permute.xlu0 %352
  %v355 = vmul.f32 %v353, %v96
  %356 = vset.pattern.permute.xlu0 33
  %357 = vperm.xlu0 %356, %v344
  %v358 = vpop.permute.xlu0 %357
  %v360 = vmul.f32 %v358, %v101
  %361 = vset.pattern.permute.xlu0 34
  %362 = vperm.xlu0 %361, %v344
  %v363 = vpop.permute.xlu0 %362
  %v365 = vmul.f32 %v363, %v106
  %366 = vset.pattern.permute.xlu0 35
  %367 = vperm.xlu0 %366, %v344
  %v368 = vpop.permute.xlu0 %367
  %v370 = vmul.f32 %v368, %v111
  %371 = vset.pattern.permute.xlu0 36
  %372 = vperm.xlu0 %371, %v344
  %v373 = vpop.permute.xlu0 %372
  %v375 = vmul.f32 %v373, %v116
  %376 = vset.pattern.permute.xlu0 37
  %377 = vperm.xlu0 %376, %v344
  %v378 = vpop.permute.xlu0 %377
  %v380 = vmul.f32 %v378, %v121
  %381 = vset.pattern.permute.xlu0 38
  %382 = vperm.xlu0 %381, %v344
  %v383 = vpop.permute.xlu0 %382
  %v385 = vmul.f32 %v383, %v126
  %386 = vset.pattern.permute.xlu0 39
  %387 = vperm.xlu0 %386, %v344
  %v388 = vpop.permute.xlu0 %387
  %v390 = vmul.f32 %v388, %v131
  %391 = vset.pattern.permute.xlu0 40
  %392 = vperm.xlu0 %391, %v344
  %v393 = vpop.permute.xlu0 %392
  %v395 = vmul.f32 %v393, %v136
  %396 = vset.pattern.permute.xlu0 41
  %397 = vperm.xlu0 %396, %v344
  %v398 = vpop.permute.xlu0 %397
  %v400 = vmul.f32 %v398, %v141
  %401 = vset.pattern.permute.xlu0 42
  %402 = vperm.xlu0 %401, %v344
  %v403 = vpop.permute.xlu0 %402
  %v405 = vmul.f32 %v403, %v146
  %406 = vset.pattern.permute.xlu0 43
  %407 = vperm.xlu0 %406, %v344
  %v408 = vpop.permute.xlu0 %407
  %v410 = vmul.f32 %v408, %v151
  %411 = vset.pattern.permute.xlu0 44
  %412 = vperm.xlu0 %411, %v344
  %v413 = vpop.permute.xlu0 %412
  %v415 = vmul.f32 %v413, %v156
  %416 = vset.pattern.permute.xlu0 45
  %417 = vperm.xlu0 %416, %v344
  %v418 = vpop.permute.xlu0 %417
  %v420 = vmul.f32 %v418, %v161
  %421 = vset.pattern.permute.xlu0 46
  %422 = vperm.xlu0 %421, %v344
  %v423 = vpop.permute.xlu0 %422
  %v425 = vmul.f32 %v423, %v166
  %426 = vset.pattern.permute.xlu0 47
  %427 = vperm.xlu0 %426, %v344
  %v428 = vpop.permute.xlu0 %427
  %v430 = vmul.f32 %v428, %v171
  %v431 = vadd.f32 %v355, %v360
  %v432 = vadd.f32 %v365, %v370
  %v433 = vadd.f32 %v375, %v380
  %v434 = vadd.f32 %v385, %v390
  %v435 = vadd.f32 %v395, %v400
  %v436 = vadd.f32 %v405, %v410
  %v437 = vadd.f32 %v415, %v420
  %v438 = vadd.f32 %v425, %v430
  %v439 = vadd.f32 %v431, %v432
  %v440 = vadd.f32 %v433, %v434
  %v441 = vadd.f32 %v435, %v436
  %v442 = vadd.f32 %v437, %v438
  %v443 = vadd.f32 %v439, %v440
  %v444 = vadd.f32 %v441, %v442
  %v445 = vadd.f32 %v443, %v444
  %v447 = vrot.slane %v445, 6
  %v449 = vadd.f32 %v349, %v447
  %v450 = vxor.u32 %v449, 2147483648
  %v451 = vmul.f32 %v450, 1.442695
  %v452 = vpow.pop %v451
  %v453 = vadd.f32 %v452, 1.0
  %v454 = vrcp.pop %v453
  %v455 = vmul.f32 1.0, %v454
  %v456 = vtanh.pop %v449
  %v458 = vrot.slane %v338, 6
  %v460 = vmul.f32 %v455, %v458
  %462 = vrot.lane.b32.xlu0 %v456, 80
  %v463 = vpop.permute.xlu0 %462
  %v465 = vmul.f32 %v455, %v463
  %467 = vrot.lane.b32.xlu0 %v465, 16
  %v468 = vpop.permute.xlu0 %467
  %v470 = vadd.f32 %v460, %v468
  %v471 = vtanh.pop %v470
  %473 = vrot.lane.b32.xlu0 %v471, 16
  %v474 = vpop.permute.xlu0 %473
  %v476 = vmul.f32 %v455, %v474
  %v477 = vlaneseq
  %v478 = vshrl.u32 %v477, 7
  %v479 = vsub.s32 3, %v478
  %v480 = vrot.slane %v83, %v479
  %v481 = vadd.f32 %v77, %v480
  %483 = vset.pattern.permute.xlu0 32
  %484 = vperm.xlu0 %483, %v476
  %v485 = vpop.permute.xlu0 %484
  %v487 = vmul.f32 %v485, %v96
  %488 = vset.pattern.permute.xlu0 33
  %489 = vperm.xlu0 %488, %v476
  %v490 = vpop.permute.xlu0 %489
  %v492 = vmul.f32 %v490, %v101
  %493 = vset.pattern.permute.xlu0 34
  %494 = vperm.xlu0 %493, %v476
  %v495 = vpop.permute.xlu0 %494
  %v497 = vmul.f32 %v495, %v106
  %498 = vset.pattern.permute.xlu0 35
  %499 = vperm.xlu0 %498, %v476
  %v500 = vpop.permute.xlu0 %499
  %v502 = vmul.f32 %v500, %v111
  %503 = vset.pattern.permute.xlu0 36
  %504 = vperm.xlu0 %503, %v476
  %v505 = vpop.permute.xlu0 %504
  %v507 = vmul.f32 %v505, %v116
  %508 = vset.pattern.permute.xlu0 37
  %509 = vperm.xlu0 %508, %v476
  %v510 = vpop.permute.xlu0 %509
  %v512 = vmul.f32 %v510, %v121
  %513 = vset.pattern.permute.xlu0 38
  %514 = vperm.xlu0 %513, %v476
  %v515 = vpop.permute.xlu0 %514
  %v517 = vmul.f32 %v515, %v126
  %518 = vset.pattern.permute.xlu0 39
  %519 = vperm.xlu0 %518, %v476
  %v520 = vpop.permute.xlu0 %519
  %v522 = vmul.f32 %v520, %v131
  %523 = vset.pattern.permute.xlu0 40
  %524 = vperm.xlu0 %523, %v476
  %v525 = vpop.permute.xlu0 %524
  %v527 = vmul.f32 %v525, %v136
  %528 = vset.pattern.permute.xlu0 41
  %529 = vperm.xlu0 %528, %v476
  %v530 = vpop.permute.xlu0 %529
  %v532 = vmul.f32 %v530, %v141
  %533 = vset.pattern.permute.xlu0 42
  %534 = vperm.xlu0 %533, %v476
  %v535 = vpop.permute.xlu0 %534
  %v537 = vmul.f32 %v535, %v146
  %538 = vset.pattern.permute.xlu0 43
  %539 = vperm.xlu0 %538, %v476
  %v540 = vpop.permute.xlu0 %539
  %v542 = vmul.f32 %v540, %v151
  %543 = vset.pattern.permute.xlu0 44
  %544 = vperm.xlu0 %543, %v476
  %v545 = vpop.permute.xlu0 %544
  %v547 = vmul.f32 %v545, %v156
  %548 = vset.pattern.permute.xlu0 45
  %549 = vperm.xlu0 %548, %v476
  %v550 = vpop.permute.xlu0 %549
  %v552 = vmul.f32 %v550, %v161
  %553 = vset.pattern.permute.xlu0 46
  %554 = vperm.xlu0 %553, %v476
  %v555 = vpop.permute.xlu0 %554
  %v557 = vmul.f32 %v555, %v166
  %558 = vset.pattern.permute.xlu0 47
  %559 = vperm.xlu0 %558, %v476
  %v560 = vpop.permute.xlu0 %559
  %v562 = vmul.f32 %v560, %v171
  %v563 = vadd.f32 %v487, %v492
  %v564 = vadd.f32 %v497, %v502
  %v565 = vadd.f32 %v507, %v512
  %v566 = vadd.f32 %v517, %v522
  %v567 = vadd.f32 %v527, %v532
  %v568 = vadd.f32 %v537, %v542
  %v569 = vadd.f32 %v547, %v552
  %v570 = vadd.f32 %v557, %v562
  %v571 = vadd.f32 %v563, %v564
  %v572 = vadd.f32 %v565, %v566
  %v573 = vadd.f32 %v567, %v568
  %v574 = vadd.f32 %v569, %v570
  %v575 = vadd.f32 %v571, %v572
  %v576 = vadd.f32 %v573, %v574
  %v577 = vadd.f32 %v575, %v576
  %v579 = vrot.slane %v577, 6
  %v581 = vadd.f32 %v481, %v579
  %v582 = vxor.u32 %v581, 2147483648
  %v583 = vmul.f32 %v582, 1.442695
  %v584 = vpow.pop %v583
  %v585 = vadd.f32 %v584, 1.0
  %v586 = vrcp.pop %v585
  %v587 = vmul.f32 1.0, %v586
  %v588 = vtanh.pop %v581
  %v590 = vrot.slane %v470, 6
  %v592 = vmul.f32 %v587, %v590
  %594 = vrot.lane.b32.xlu0 %v588, 80
  %v595 = vpop.permute.xlu0 %594
  %v597 = vmul.f32 %v587, %v595
  %599 = vrot.lane.b32.xlu0 %v597, 16
  %v600 = vpop.permute.xlu0 %599
  %v602 = vadd.f32 %v592, %v600
  %v603 = vtanh.pop %v602
  %605 = vrot.lane.b32.xlu0 %v603, 16
  %v606 = vpop.permute.xlu0 %605
  %v608 = vmul.f32 %v587, %v606
  %v609 = vlaneseq
  %v610 = vshrl.u32 %v609, 7
  %v611 = vsub.s32 4, %v610
  %v612 = vrot.slane %v83, %v611
  %v613 = vadd.f32 %v80, %v612
  %615 = vset.pattern.permute.xlu0 32
  %616 = vperm.xlu0 %615, %v608
  %v617 = vpop.permute.xlu0 %616
  %v619 = vmul.f32 %v617, %v96
  %620 = vset.pattern.permute.xlu0 33
  %621 = vperm.xlu0 %620, %v608
  %v622 = vpop.permute.xlu0 %621
  %v624 = vmul.f32 %v622, %v101
  %625 = vset.pattern.permute.xlu0 34
  %626 = vperm.xlu0 %625, %v608
  %v627 = vpop.permute.xlu0 %626
  %v629 = vmul.f32 %v627, %v106
  %630 = vset.pattern.permute.xlu0 35
  %631 = vperm.xlu0 %630, %v608
  %v632 = vpop.permute.xlu0 %631
  %v634 = vmul.f32 %v632, %v111
  %635 = vset.pattern.permute.xlu0 36
  %636 = vperm.xlu0 %635, %v608
  %v637 = vpop.permute.xlu0 %636
  %v639 = vmul.f32 %v637, %v116
  %640 = vset.pattern.permute.xlu0 37
  %641 = vperm.xlu0 %640, %v608
  %v642 = vpop.permute.xlu0 %641
  %v644 = vmul.f32 %v642, %v121
  %645 = vset.pattern.permute.xlu0 38
  %646 = vperm.xlu0 %645, %v608
  %v647 = vpop.permute.xlu0 %646
  %v649 = vmul.f32 %v647, %v126
  %650 = vset.pattern.permute.xlu0 39
  %651 = vperm.xlu0 %650, %v608
  %v652 = vpop.permute.xlu0 %651
  %v654 = vmul.f32 %v652, %v131
  %655 = vset.pattern.permute.xlu0 40
  %656 = vperm.xlu0 %655, %v608
  %v657 = vpop.permute.xlu0 %656
  %v659 = vmul.f32 %v657, %v136
  %660 = vset.pattern.permute.xlu0 41
  %661 = vperm.xlu0 %660, %v608
  %v662 = vpop.permute.xlu0 %661
  %v664 = vmul.f32 %v662, %v141
  %665 = vset.pattern.permute.xlu0 42
  %666 = vperm.xlu0 %665, %v608
  %v667 = vpop.permute.xlu0 %666
  %v669 = vmul.f32 %v667, %v146
  %670 = vset.pattern.permute.xlu0 43
  %671 = vperm.xlu0 %670, %v608
  %v672 = vpop.permute.xlu0 %671
  %v674 = vmul.f32 %v672, %v151
  %675 = vset.pattern.permute.xlu0 44
  %676 = vperm.xlu0 %675, %v608
  %v677 = vpop.permute.xlu0 %676
  %v679 = vmul.f32 %v677, %v156
  %680 = vset.pattern.permute.xlu0 45
  %681 = vperm.xlu0 %680, %v608
  %v682 = vpop.permute.xlu0 %681
  %v684 = vmul.f32 %v682, %v161
  %685 = vset.pattern.permute.xlu0 46
  %686 = vperm.xlu0 %685, %v608
  %v687 = vpop.permute.xlu0 %686
  %v689 = vmul.f32 %v687, %v166
  %690 = vset.pattern.permute.xlu0 47
  %691 = vperm.xlu0 %690, %v608
  %v692 = vpop.permute.xlu0 %691
  %v694 = vmul.f32 %v692, %v171
  %v695 = vadd.f32 %v619, %v624
  %v696 = vadd.f32 %v629, %v634
  %v697 = vadd.f32 %v639, %v644
  %v698 = vadd.f32 %v649, %v654
  %v699 = vadd.f32 %v659, %v664
  %v700 = vadd.f32 %v669, %v674
  %v701 = vadd.f32 %v679, %v684
  %v702 = vadd.f32 %v689, %v694
  %v703 = vadd.f32 %v695, %v696
  %v704 = vadd.f32 %v697, %v698
  %v705 = vadd.f32 %v699, %v700
  %v706 = vadd.f32 %v701, %v702
  %v707 = vadd.f32 %v703, %v704
  %v708 = vadd.f32 %v705, %v706
  %v709 = vadd.f32 %v707, %v708
  %v711 = vrot.slane %v709, 6
  %v713 = vadd.f32 %v613, %v711
  %v714 = vxor.u32 %v713, 2147483648
  %v715 = vmul.f32 %v714, 1.442695
  %v716 = vpow.pop %v715
  %v717 = vadd.f32 %v716, 1.0
  %v718 = vrcp.pop %v717
  %v719 = vmul.f32 1.0, %v718
  %v720 = vtanh.pop %v713
  %v722 = vrot.slane %v602, 6
  %v724 = vmul.f32 %v719, %v722
  %726 = vrot.lane.b32.xlu0 %v720, 80
  %v727 = vpop.permute.xlu0 %726
  %v729 = vmul.f32 %v719, %v727
  %731 = vrot.lane.b32.xlu0 %v729, 16
  %v732 = vpop.permute.xlu0 %731
  %v734 = vadd.f32 %v724, %v732
  %v735 = vtanh.pop %v734
  %737 = vrot.lane.b32.xlu0 %v735, 16
  %v738 = vpop.permute.xlu0 %737
  %v740 = vmul.f32 %v719, %v738
  %v741 = vlaneseq
  %v742 = vshrl.u32 %v741, 7
  %v743 = vsub.s32 5, %v742
  %v744 = vrot.slane %v83, %v743
  %v745 = vadd.f32 %v80, %v744
  %747 = vset.pattern.permute.xlu0 32
  %748 = vperm.xlu0 %747, %v740
  %v749 = vpop.permute.xlu0 %748
  %v751 = vmul.f32 %v749, %v96
  %752 = vset.pattern.permute.xlu0 33
  %753 = vperm.xlu0 %752, %v740
  %v754 = vpop.permute.xlu0 %753
  %v756 = vmul.f32 %v754, %v101
  %757 = vset.pattern.permute.xlu0 34
  %758 = vperm.xlu0 %757, %v740
  %v759 = vpop.permute.xlu0 %758
  %v761 = vmul.f32 %v759, %v106
  %762 = vset.pattern.permute.xlu0 35
  %763 = vperm.xlu0 %762, %v740
  %v764 = vpop.permute.xlu0 %763
  %v766 = vmul.f32 %v764, %v111
  %767 = vset.pattern.permute.xlu0 36
  %768 = vperm.xlu0 %767, %v740
  %v769 = vpop.permute.xlu0 %768
  %v771 = vmul.f32 %v769, %v116
  %772 = vset.pattern.permute.xlu0 37
  %773 = vperm.xlu0 %772, %v740
  %v774 = vpop.permute.xlu0 %773
  %v776 = vmul.f32 %v774, %v121
  %777 = vset.pattern.permute.xlu0 38
  %778 = vperm.xlu0 %777, %v740
  %v779 = vpop.permute.xlu0 %778
  %v781 = vmul.f32 %v779, %v126
  %782 = vset.pattern.permute.xlu0 39
  %783 = vperm.xlu0 %782, %v740
  %v784 = vpop.permute.xlu0 %783
  %v786 = vmul.f32 %v784, %v131
  %787 = vset.pattern.permute.xlu0 40
  %788 = vperm.xlu0 %787, %v740
  %v789 = vpop.permute.xlu0 %788
  %v791 = vmul.f32 %v789, %v136
  %792 = vset.pattern.permute.xlu0 41
  %793 = vperm.xlu0 %792, %v740
  %v794 = vpop.permute.xlu0 %793
  %v796 = vmul.f32 %v794, %v141
  %797 = vset.pattern.permute.xlu0 42
  %798 = vperm.xlu0 %797, %v740
  %v799 = vpop.permute.xlu0 %798
  %v801 = vmul.f32 %v799, %v146
  %802 = vset.pattern.permute.xlu0 43
  %803 = vperm.xlu0 %802, %v740
  %v804 = vpop.permute.xlu0 %803
  %v806 = vmul.f32 %v804, %v151
  %807 = vset.pattern.permute.xlu0 44
  %808 = vperm.xlu0 %807, %v740
  %v809 = vpop.permute.xlu0 %808
  %v811 = vmul.f32 %v809, %v156
  %812 = vset.pattern.permute.xlu0 45
  %813 = vperm.xlu0 %812, %v740
  %v814 = vpop.permute.xlu0 %813
  %v816 = vmul.f32 %v814, %v161
  %817 = vset.pattern.permute.xlu0 46
  %818 = vperm.xlu0 %817, %v740
  %v819 = vpop.permute.xlu0 %818
  %v821 = vmul.f32 %v819, %v166
  %822 = vset.pattern.permute.xlu0 47
  %823 = vperm.xlu0 %822, %v740
  %v824 = vpop.permute.xlu0 %823
  %v826 = vmul.f32 %v824, %v171
  %v827 = vadd.f32 %v751, %v756
  %v828 = vadd.f32 %v761, %v766
  %v829 = vadd.f32 %v771, %v776
  %v830 = vadd.f32 %v781, %v786
  %v831 = vadd.f32 %v791, %v796
  %v832 = vadd.f32 %v801, %v806
  %v833 = vadd.f32 %v811, %v816
  %v834 = vadd.f32 %v821, %v826
  %v835 = vadd.f32 %v827, %v828
  %v836 = vadd.f32 %v829, %v830
  %v837 = vadd.f32 %v831, %v832
  %v838 = vadd.f32 %v833, %v834
  %v839 = vadd.f32 %v835, %v836
  %v840 = vadd.f32 %v837, %v838
  %v841 = vadd.f32 %v839, %v840
  %v843 = vrot.slane %v841, 6
  %v845 = vadd.f32 %v745, %v843
  %v846 = vxor.u32 %v845, 2147483648
  %v847 = vmul.f32 %v846, 1.442695
  %v848 = vpow.pop %v847
  %v849 = vadd.f32 %v848, 1.0
  %v850 = vrcp.pop %v849
  %v851 = vmul.f32 1.0, %v850
  %v852 = vtanh.pop %v845
  %v854 = vrot.slane %v734, 6
  %v856 = vmul.f32 %v851, %v854
  %858 = vrot.lane.b32.xlu0 %v852, 80
  %v859 = vpop.permute.xlu0 %858
  %v861 = vmul.f32 %v851, %v859
  %863 = vrot.lane.b32.xlu0 %v861, 16
  %v864 = vpop.permute.xlu0 %863
  %v866 = vadd.f32 %v856, %v864
  %v867 = vtanh.pop %v866
  %869 = vrot.lane.b32.xlu0 %v867, 16
  %v870 = vpop.permute.xlu0 %869
  %v872 = vmul.f32 %v851, %v870
  %v873 = vlaneseq
  %v874 = vshrl.u32 %v873, 7
  %v875 = vsub.s32 6, %v874
  %v876 = vrot.slane %v83, %v875
  %v877 = vadd.f32 %v80, %v876
  %879 = vset.pattern.permute.xlu0 32
  %880 = vperm.xlu0 %879, %v872
  %v881 = vpop.permute.xlu0 %880
  %v883 = vmul.f32 %v881, %v96
  %884 = vset.pattern.permute.xlu0 33
  %885 = vperm.xlu0 %884, %v872
  %v886 = vpop.permute.xlu0 %885
  %v888 = vmul.f32 %v886, %v101
  %889 = vset.pattern.permute.xlu0 34
  %890 = vperm.xlu0 %889, %v872
  %v891 = vpop.permute.xlu0 %890
  %v893 = vmul.f32 %v891, %v106
  %894 = vset.pattern.permute.xlu0 35
  %895 = vperm.xlu0 %894, %v872
  %v896 = vpop.permute.xlu0 %895
  %v898 = vmul.f32 %v896, %v111
  %899 = vset.pattern.permute.xlu0 36
  %900 = vperm.xlu0 %899, %v872
  %v901 = vpop.permute.xlu0 %900
  %v903 = vmul.f32 %v901, %v116
  %904 = vset.pattern.permute.xlu0 37
  %905 = vperm.xlu0 %904, %v872
  %v906 = vpop.permute.xlu0 %905
  %v908 = vmul.f32 %v906, %v121
  %909 = vset.pattern.permute.xlu0 38
  %910 = vperm.xlu0 %909, %v872
  %v911 = vpop.permute.xlu0 %910
  %v913 = vmul.f32 %v911, %v126
  %914 = vset.pattern.permute.xlu0 39
  %915 = vperm.xlu0 %914, %v872
  %v916 = vpop.permute.xlu0 %915
  %v918 = vmul.f32 %v916, %v131
  %919 = vset.pattern.permute.xlu0 40
  %920 = vperm.xlu0 %919, %v872
  %v921 = vpop.permute.xlu0 %920
  %v923 = vmul.f32 %v921, %v136
  %924 = vset.pattern.permute.xlu0 41
  %925 = vperm.xlu0 %924, %v872
  %v926 = vpop.permute.xlu0 %925
  %v928 = vmul.f32 %v926, %v141
  %929 = vset.pattern.permute.xlu0 42
  %930 = vperm.xlu0 %929, %v872
  %v931 = vpop.permute.xlu0 %930
  %v933 = vmul.f32 %v931, %v146
  %934 = vset.pattern.permute.xlu0 43
  %935 = vperm.xlu0 %934, %v872
  %v936 = vpop.permute.xlu0 %935
  %v938 = vmul.f32 %v936, %v151
  %939 = vset.pattern.permute.xlu0 44
  %940 = vperm.xlu0 %939, %v872
  %v941 = vpop.permute.xlu0 %940
  %v943 = vmul.f32 %v941, %v156
  %944 = vset.pattern.permute.xlu0 45
  %945 = vperm.xlu0 %944, %v872
  %v946 = vpop.permute.xlu0 %945
  %v948 = vmul.f32 %v946, %v161
  %949 = vset.pattern.permute.xlu0 46
  %950 = vperm.xlu0 %949, %v872
  %v951 = vpop.permute.xlu0 %950
  %v953 = vmul.f32 %v951, %v166
  %954 = vset.pattern.permute.xlu0 47
  %955 = vperm.xlu0 %954, %v872
  %v956 = vpop.permute.xlu0 %955
  %v958 = vmul.f32 %v956, %v171
  %v959 = vadd.f32 %v883, %v888
  %v960 = vadd.f32 %v893, %v898
  %v961 = vadd.f32 %v903, %v908
  %v962 = vadd.f32 %v913, %v918
  %v963 = vadd.f32 %v923, %v928
  %v964 = vadd.f32 %v933, %v938
  %v965 = vadd.f32 %v943, %v948
  %v966 = vadd.f32 %v953, %v958
  %v967 = vadd.f32 %v959, %v960
  %v968 = vadd.f32 %v961, %v962
  %v969 = vadd.f32 %v963, %v964
  %v970 = vadd.f32 %v965, %v966
  %v971 = vadd.f32 %v967, %v968
  %v972 = vadd.f32 %v969, %v970
  %v973 = vadd.f32 %v971, %v972
  %v975 = vrot.slane %v973, 6
  %v977 = vadd.f32 %v877, %v975
  %v978 = vxor.u32 %v977, 2147483648
  %v979 = vmul.f32 %v978, 1.442695
  %v980 = vpow.pop %v979
  %v981 = vadd.f32 %v980, 1.0
  %v982 = vrcp.pop %v981
  %v983 = vmul.f32 1.0, %v982
  %v984 = vtanh.pop %v977
  %v986 = vrot.slane %v866, 6
  %v988 = vmul.f32 %v983, %v986
  %990 = vrot.lane.b32.xlu0 %v984, 80
  %v991 = vpop.permute.xlu0 %990
  %v993 = vmul.f32 %v983, %v991
  %995 = vrot.lane.b32.xlu0 %v993, 16
  %v996 = vpop.permute.xlu0 %995
  %v998 = vadd.f32 %v988, %v996
  %v999 = vtanh.pop %v998
  %1001 = vrot.lane.b32.xlu0 %v999, 16
  %v1002 = vpop.permute.xlu0 %1001
  %v1004 = vmul.f32 %v983, %v1002
  %v1005 = vlaneseq
  %v1006 = vshrl.u32 %v1005, 7
  %v1007 = vsub.s32 7, %v1006
  %v1008 = vrot.slane %v83, %v1007
  %v1009 = vadd.f32 %v80, %v1008
  %1011 = vset.pattern.permute.xlu0 32
  %1012 = vperm.xlu0 %1011, %v1004
  %v1013 = vpop.permute.xlu0 %1012
  %v1015 = vmul.f32 %v1013, %v96
  %1016 = vset.pattern.permute.xlu0 33
  %1017 = vperm.xlu0 %1016, %v1004
  %v1018 = vpop.permute.xlu0 %1017
  %v1020 = vmul.f32 %v1018, %v101
  %1021 = vset.pattern.permute.xlu0 34
  %1022 = vperm.xlu0 %1021, %v1004
  %v1023 = vpop.permute.xlu0 %1022
  %v1025 = vmul.f32 %v1023, %v106
  %1026 = vset.pattern.permute.xlu0 35
  %1027 = vperm.xlu0 %1026, %v1004
  %v1028 = vpop.permute.xlu0 %1027
  %v1030 = vmul.f32 %v1028, %v111
  %1031 = vset.pattern.permute.xlu0 36
  %1032 = vperm.xlu0 %1031, %v1004
  %v1033 = vpop.permute.xlu0 %1032
  %v1035 = vmul.f32 %v1033, %v116
  %1036 = vset.pattern.permute.xlu0 37
  %1037 = vperm.xlu0 %1036, %v1004
  %v1038 = vpop.permute.xlu0 %1037
  %v1040 = vmul.f32 %v1038, %v121
  %1041 = vset.pattern.permute.xlu0 38
  %1042 = vperm.xlu0 %1041, %v1004
  %v1043 = vpop.permute.xlu0 %1042
  %v1045 = vmul.f32 %v1043, %v126
  %1046 = vset.pattern.permute.xlu0 39
  %1047 = vperm.xlu0 %1046, %v1004
  %v1048 = vpop.permute.xlu0 %1047
  %v1050 = vmul.f32 %v1048, %v131
  %1051 = vset.pattern.permute.xlu0 40
  %1052 = vperm.xlu0 %1051, %v1004
  %v1053 = vpop.permute.xlu0 %1052
  %v1055 = vmul.f32 %v1053, %v136
  %1056 = vset.pattern.permute.xlu0 41
  %1057 = vperm.xlu0 %1056, %v1004
  %v1058 = vpop.permute.xlu0 %1057
  %v1060 = vmul.f32 %v1058, %v141
  %1061 = vset.pattern.permute.xlu0 42
  %1062 = vperm.xlu0 %1061, %v1004
  %v1063 = vpop.permute.xlu0 %1062
  %v1065 = vmul.f32 %v1063, %v146
  %1066 = vset.pattern.permute.xlu0 43
  %1067 = vperm.xlu0 %1066, %v1004
  %v1068 = vpop.permute.xlu0 %1067
  %v1070 = vmul.f32 %v1068, %v151
  %1071 = vset.pattern.permute.xlu0 44
  %1072 = vperm.xlu0 %1071, %v1004
  %v1073 = vpop.permute.xlu0 %1072
  %v1075 = vmul.f32 %v1073, %v156
  %1076 = vset.pattern.permute.xlu0 45
  %1077 = vperm.xlu0 %1076, %v1004
  %v1078 = vpop.permute.xlu0 %1077
  %v1080 = vmul.f32 %v1078, %v161
  %1081 = vset.pattern.permute.xlu0 46
  %1082 = vperm.xlu0 %1081, %v1004
  %v1083 = vpop.permute.xlu0 %1082
  %v1085 = vmul.f32 %v1083, %v166
  %1086 = vset.pattern.permute.xlu0 47
  %1087 = vperm.xlu0 %1086, %v1004
  %v1088 = vpop.permute.xlu0 %1087
  %v1090 = vmul.f32 %v1088, %v171
  %v1091 = vadd.f32 %v1015, %v1020
  %v1092 = vadd.f32 %v1025, %v1030
  %v1093 = vadd.f32 %v1035, %v1040
  %v1094 = vadd.f32 %v1045, %v1050
  %v1095 = vadd.f32 %v1055, %v1060
  %v1096 = vadd.f32 %v1065, %v1070
  %v1097 = vadd.f32 %v1075, %v1080
  %v1098 = vadd.f32 %v1085, %v1090
  %v1099 = vadd.f32 %v1091, %v1092
  %v1100 = vadd.f32 %v1093, %v1094
  %v1101 = vadd.f32 %v1095, %v1096
  %v1102 = vadd.f32 %v1097, %v1098
  %v1103 = vadd.f32 %v1099, %v1100
  %v1104 = vadd.f32 %v1101, %v1102
  %v1105 = vadd.f32 %v1103, %v1104
  %v1107 = vrot.slane %v1105, 6
  %v1109 = vadd.f32 %v1009, %v1107
  %v1110 = vxor.u32 %v1109, 2147483648
  %v1111 = vmul.f32 %v1110, 1.442695
  %v1112 = vpow.pop %v1111
  %v1113 = vadd.f32 %v1112, 1.0
  %v1114 = vrcp.pop %v1113
  %v1115 = vmul.f32 1.0, %v1114
  %v1116 = vtanh.pop %v1109
  %v1118 = vrot.slane %v998, 6
  %v1120 = vmul.f32 %v1115, %v1118
  %1122 = vrot.lane.b32.xlu0 %v1116, 80
  %v1123 = vpop.permute.xlu0 %1122
  %v1125 = vmul.f32 %v1115, %v1123
  %1127 = vrot.lane.b32.xlu0 %v1125, 16
  %v1128 = vpop.permute.xlu0 %1127
  %v1130 = vadd.f32 %v1120, %v1128
  %v1131 = vtanh.pop %v1130
  %1133 = vrot.lane.b32.xlu0 %v1131, 16
  %v1134 = vpop.permute.xlu0 %1133
  %v1136 = vmul.f32 %v1115, %v1134
  %vm1137 = vcmask 1041408
  %v1138 = vsel %vm1137, %v212, %v344
  %vm1139 = vcmask 1043456
  %v1140 = vsel %vm1139, %v1138, %v476
  %vm1141 = vcmask 1045504
  %v1142 = vsel %vm1141, %v1140, %v608
  %v1143 = vsel %vm1137, %v740, %v872
  %v1144 = vsel %vm1139, %v1143, %v1004
  %v1145 = vsel %vm1141, %v1144, %v1136
  %v1146 = vlaneseq
  %v1147 = vshrl.u32 %v1146, 7
  %v1148 = vsub.s32 0, %v1147
  %v1149 = vrot.slane %v86, %v1148
  %1151 = vrot.lane.b32.xlu0 %v1149, 32
  %v1152 = vpop.permute.xlu0 %1151
  %v1154 = vmul.f32 %v1142, %v1152
  %v1155 = vmul.f32 %v1145, %v1152
  %1158 = vrot.lane.b32.xlu0 %v1154, 96
  %v1159 = vpop.permute.xlu0 %1158
  %1160 = vrot.lane.b32.xlu0 %v1155, 96
  %v1161 = vpop.permute.xlu0 %1160
  %vm1164 = vcmask 130048
  %v1165 = vsel %vm1164, %v1159, 0.0
  %1166 = vadd.xlane.f32.xlu0 %v1165
  %v1167 = vpop.xlane.xlu0 %1166
  %v1168 = vsel %vm1164, %v1161, 0.0
  %1169 = vadd.xlane.f32.xlu0 %v1168
  %v1170 = vpop.xlane.xlu0 %1169
  %v1171 = vlaneseq
  %v1172 = vshrl.u32 %v1171, 7
  %v1173 = vsub.s32 0, %v1172
  %v1174 = vrot.slane %v87, %v1173
  %v1175 = vadd.f32 %v1167, %v1174
  %v1176 = vadd.f32 %v1170, %v1174
  %vm1177 = vcmask 7168
  %1178 = vst.msk [vmem:[%s3] sm:$0xff] %vm1177, %v1175
  %1179 = vst.msk [vmem:[%s3 + $0x8] sm:$0xff] %vm1177, %v1176
  // Predicated region
  $region14: #{srl_forward.1} parent=0 // pred_check
    _
  $region15: #{srl_forward.1} parent=0 // pred_check_branch
    %1181 = sbr.rel (0) target = $region17
  $region16: #{srl_forward.1} parent=0 // pred_region
    _
  $region17: #{srl_forward.1} parent=0 // pred_fallthru
    _
  // Predicated region
  $region18: #{srl_forward.1} parent=0 // pred_check
    _
  $region19: #{srl_forward.1} parent=0 // pred_check_branch
    %1183 = sbr.rel (0) target = $region21
  $region20: #{srl_forward.1} parent=0 // pred_region
    _
  $region21: #{srl_forward.1} parent=0 // pred_fallthru
    _

</llo_original>
